<compile_context>
chip_gen: v6e
topology: v6e:2x2x1
jax: 0.10.0
libtpu: 0.0.40
codegen_flags: <defaults>
</compile_context>

<pallas_src>
import jax
import jax.numpy as jnp
from jax.experimental import pallas as pl
from jax.experimental.pallas import tpu as pltpu


def _bce_hard_label(p, y):
    # Single-log BCE, exact for hard {0,1} labels; matches
    # torch.nn.functional.binary_cross_entropy's -100 log clamp
    # (log(1-p) vs log1p(-p) differ by <= 1 ulp for p < 0.5).
    p_true = jnp.where(y > 0.5, p, 1.0 - p)
    return -jnp.maximum(jnp.log(p_true), -100.0)


def _casrel_loss_kernel(ss_res_ref, se_res_ref, os_res_ref, oe_res_ref,
                        ss_lab_ref, se_lab_ref, os_lab_ref, oe_lab_ref,
                        pad_mask_ref, out_ref):
    # Grid: (core_chunk "parallel", batch_chunk "arbitrary").  out_ref is the
    # per-core (3, seq_l) partial-sum accumulator (resident across axis 1).
    b = pl.program_id(1)

    @pl.when(b == 0)
    def _init():
        out_ref[...] = jnp.zeros_like(out_ref)

    bt, seq_l = pad_mask_ref.shape

    # mask = 1 - pad_mask : 1.0 at real tokens.  (bt, seq_l), seq_l on lanes.
    valid = 1.0 - pad_mask_ref[...]

    # ---- subject losses: batched (bt, seq_l) tiles ----
    ss = _bce_hard_label(ss_res_ref[...].astype(jnp.float32),
                         ss_lab_ref[...].astype(jnp.float32))
    se = _bce_hard_label(se_res_ref[...].astype(jnp.float32),
                         se_lab_ref[...].astype(jnp.float32))
    subj_vec = jnp.sum((ss + se) * valid, axis=0, keepdims=True)   # (1, seq_l)
    msk_vec = jnp.sum(valid, axis=0, keepdims=True)                # (1, seq_l)

    # ---- object losses: per-row 2-D transpose (XLU) so seq_l stays on lanes
    # and matches the native (rel, seq_l) label layout.  Static unroll over bt
    # keeps only proven 2-D transposes in the lowering.  The valid-mask
    # multiply is folded after the rel-reduction (rel-independent).
    obj_vec = jnp.zeros((1, seq_l), jnp.float32)
    for i in range(bt):
        os_p = jnp.transpose(os_res_ref[i].astype(jnp.float32))    # (rel, seq_l)
        oe_p = jnp.transpose(oe_res_ref[i].astype(jnp.float32))
        osb = _bce_hard_label(os_p, os_lab_ref[i].astype(jnp.float32))
        oeb = _bce_hard_label(oe_p, oe_lab_ref[i].astype(jnp.float32))
        obj_vec = obj_vec + (jnp.sum(osb + oeb, axis=0, keepdims=True)
                             * valid[i:i + 1, :])

    out_ref[0:1, :] = out_ref[0:1, :] + subj_vec
    out_ref[1:2, :] = out_ref[1:2, :] + obj_vec
    out_ref[2:3, :] = out_ref[2:3, :] + msk_vec


def _pick_bt(bsz, max_bt):
    # Largest divisor of bsz that is <= max_bt (so no partial batch blocks).
    for bt in range(min(bsz, max_bt), 0, -1):
        if bsz % bt == 0:
            return bt
    return 1


def casrel_loss2(subject_start_result, subject_end_result,
                 object_start_result, object_end_result,
                 subject_start_label, subject_end_label,
                 object_start_label, object_end_label,
                 mask, lamb=0.6, max_bt=8):
    bsz, seq_l, relation_cnt = object_start_result.shape

    # Layout-only glue (no f32 copies / transposes of the big tensors).
    ss_res = jnp.squeeze(subject_start_result, -1)   # (bsz, seq_l)
    se_res = jnp.squeeze(subject_end_result, -1)
    # Tiny (bsz, seq_l) array: f32 keeps the block-tiling constraints trivially
    # satisfied for any BT; its HBM traffic is negligible vs the object tensors.
    pad_mask = mask.astype(jnp.float32)

    bt = _pick_bt(bsz, max_bt)
    nb = bsz // bt                                   # total batch chunks
    nc = 2 if (nb >= 2 and nb % 2 == 0) else 1       # cores used on v7x
    nb_inner = nb // nc

    def bmap2(c, b):
        return (c * nb_inner + b, 0)

    def bmap3(c, b):
        return (c * nb_inner + b, 0, 0)

    grid_spec = pltpu.PrefetchScalarGridSpec(
        num_scalar_prefetch=0,
        grid=(nc, nb_inner),
        in_specs=[
            pl.BlockSpec((bt, seq_l), bmap2),                    # ss_res
            pl.BlockSpec((bt, seq_l), bmap2),                    # se_res
            pl.BlockSpec((bt, seq_l, relation_cnt), bmap3),      # os_res
            pl.BlockSpec((bt, seq_l, relation_cnt), bmap3),      # oe_res
            pl.BlockSpec((bt, seq_l), bmap2),                    # ss_lab
            pl.BlockSpec((bt, seq_l), bmap2),                    # se_lab
            pl.BlockSpec((bt, relation_cnt, seq_l), bmap3),      # os_lab (any dtype)
            pl.BlockSpec((bt, relation_cnt, seq_l), bmap3),      # oe_lab (any dtype)
            pl.BlockSpec((bt, seq_l), bmap2),                    # pad_mask
        ],
        # Per-core partial sums: rows = [subj, obj, mask], lane-dense over seq_l.
        out_specs=pl.BlockSpec((None, 3, seq_l), lambda c, b: (c, 0, 0)),
    )

    partials = pl.pallas_call(
        _casrel_loss_kernel,
        out_shape=jax.ShapeDtypeStruct((nc, 3, seq_l), jnp.float32),
        grid_spec=grid_spec,
        compiler_params=pltpu.CompilerParams(
            dimension_semantics=("parallel", "arbitrary")),
    )(ss_res, se_res, object_start_result, object_end_result,
      subject_start_label, subject_end_label,
      object_start_label, object_end_label, pad_mask)

    # Tiny final combine + normalization (NC*3*seq_l elements).
    sums = jnp.sum(partials, axis=(0, 2))            # (3,)
    subj_sum, obj_sum, msum = sums[0], sums[1], sums[2]
    lamb = jnp.float32(lamb)
    loss = (lamb * (subj_sum / msum)
            + (1.0 - lamb) * (obj_sum / (msum * relation_cnt)))
    return loss


# ---------------------------------------------------------------------------
# Pure-JAX reference (torch-faithful two-term BCE with -100 clamp) for testing.
# ---------------------------------------------------------------------------
def _bce_two_term(p, y):
    log_p = jnp.maximum(jnp.log(p), -100.0)
    log_1mp = jnp.maximum(jnp.log1p(-p), -100.0)
    return -(y * log_p + (1.0 - y) * log_1mp)


def _reference_loss(ssr, ser, osr, oer, ssl, sel, osl, oel, mask, lamb=0.6):
    m = 1.0 - mask.astype(jnp.float32)
    rel = osr.shape[2]
    ss = _bce_two_term(jnp.squeeze(ssr, -1), ssl.astype(jnp.float32))
    se = _bce_two_term(jnp.squeeze(ser, -1), sel.astype(jnp.float32))
    osl_p = jnp.transpose(osl.astype(jnp.float32), (0, 2, 1))
    oel_p = jnp.transpose(oel.astype(jnp.float32), (0, 2, 1))
    osb = _bce_two_term(osr, osl_p)
    oeb = _bce_two_term(oer, oel_p)
    msum = jnp.sum(m)
    ss_loss = jnp.sum(ss * m) / msum
    se_loss = jnp.sum(se * m) / msum
    os_loss = jnp.sum(osb * m[:, :, None]) / (msum * rel)
    oe_loss = jnp.sum(oeb * m[:, :, None]) / (msum * rel)
    return lamb * (ss_loss + se_loss) + (1 - lamb) * (os_loss + oe_loss)


if __name__ == "__main__":
    bsz, seq_l, relation_cnt = 8, 128, 8

    key = jax.random.PRNGKey(0)
    ks = jax.random.split(key, 9)

    # predictions are probabilities in (0, 1)
    ssr = jax.nn.sigmoid(jax.random.normal(ks[0], (bsz, seq_l, 1), jnp.float32))
    ser = jax.nn.sigmoid(jax.random.normal(ks[1], (bsz, seq_l, 1), jnp.float32))
    osr = jax.nn.sigmoid(jax.random.normal(ks[2], (bsz, seq_l, relation_cnt), jnp.float32))
    oer = jax.nn.sigmoid(jax.random.normal(ks[3], (bsz, seq_l, relation_cnt), jnp.float32))

    # labels are hard {0, 1}; object labels stream in narrow int8
    ssl = jax.random.bernoulli(ks[4], 0.1, (bsz, seq_l)).astype(jnp.float32)
    sel = jax.random.bernoulli(ks[5], 0.1, (bsz, seq_l)).astype(jnp.float32)
    osl = jax.random.bernoulli(ks[6], 0.05, (bsz, relation_cnt, seq_l)).astype(jnp.int8)
    oel = jax.random.bernoulli(ks[7], 0.05, (bsz, relation_cnt, seq_l)).astype(jnp.int8)

    # pad mask: True at padded positions (tail of each sequence)
    lengths = jnp.array([100, 73, 128, 5, 64, 90, 17, 128], dtype=jnp.int32)
    positions = jnp.arange(seq_l)[None, :]
    pad_mask = positions >= lengths[:, None]          # (bsz, seq_l) bool, True = pad

    ref = _reference_loss(ssr, ser, osr, oer, ssl, sel, osl, oel, pad_mask, lamb=0.6)

    # Path 1: single chunk (BT = bsz), single core group.
    loss_a = casrel_loss2(ssr, ser, osr, oer, ssl, sel, osl, oel, pad_mask,
                          lamb=0.6)
    loss_a = jax.block_until_ready(loss_a)
    assert jnp.allclose(loss_a, ref, rtol=1e-5, atol=1e-5), (loss_a, ref)

    # Path 2: multi-chunk accumulation + dual-core-style (NC=2) partials.
    loss_b = casrel_loss2(ssr, ser, osr, oer, ssl, sel, osl, oel, pad_mask,
                          lamb=0.6, max_bt=2)
    loss_b = jax.block_until_ready(loss_b)
    assert jnp.allclose(loss_b, ref, rtol=1e-5, atol=1e-5), (loss_b, ref)

    print("KERNEL_OK")
</pallas_src>

<mosaic_0001>
module attributes {stable_mosaic.version = 11 : i64} {
  func.func @_casrel_loss_kernel(%arg0: i32, %arg1: i32, %arg2: memref<8x128xf32, #tpu.memory_space<vmem>>, %arg3: memref<8x128xf32, #tpu.memory_space<vmem>>, %arg4: memref<8x128x8xf32, #tpu.memory_space<vmem>>, %arg5: memref<8x128x8xf32, #tpu.memory_space<vmem>>, %arg6: memref<8x128xf32, #tpu.memory_space<vmem>>, %arg7: memref<8x128xf32, #tpu.memory_space<vmem>>, %arg8: memref<8x8x128xi8, #tpu.memory_space<vmem>>, %arg9: memref<8x8x128xi8, #tpu.memory_space<vmem>>, %arg10: memref<8x128xf32, #tpu.memory_space<vmem>>, %arg11: memref<1x3x128xf32, #tpu.memory_space<vmem>>) attributes {dimension_semantics = [#tpu.dimension_semantics<parallel>, #tpu.dimension_semantics<arbitrary>], iteration_bounds = array<i64: 1, 1>, scalar_prefetch = 0 : i64, scratch_operands = 0 : i64, tpu.core_type = #tpu.core_type<tc>, window_params = [{transform_indices = @transform_0, window_bounds = array<i64: 8, 128>}, {transform_indices = @transform_1, window_bounds = array<i64: 8, 128>}, {transform_indices = @transform_2, window_bounds = array<i64: 8, 128, 8>}, {transform_indices = @transform_3, window_bounds = array<i64: 8, 128, 8>}, {transform_indices = @transform_4, window_bounds = array<i64: 8, 128>}, {transform_indices = @transform_5, window_bounds = array<i64: 8, 128>}, {transform_indices = @transform_6, window_bounds = array<i64: 8, 8, 128>}, {transform_indices = @transform_7, window_bounds = array<i64: 8, 8, 128>}, {transform_indices = @transform_8, window_bounds = array<i64: 8, 128>}, {transform_indices = @transform_9, window_bounds = array<i64: 1, 3, 128>}]} {
    %c0_i32 = arith.constant 0 : i32
    %0 = arith.cmpi eq, %arg1, %c0_i32 : i32
    %1 = arith.extui %0 : i1 to i32
    %c0_i32_0 = arith.constant 0 : i32
    %2 = arith.cmpi ne, %1, %c0_i32_0 : i32
    scf.if %2 {
      %cst_200 = arith.constant 0.000000e+00 : f32
      %359 = vector.broadcast %cst_200 : f32 to vector<3x128xf32>
      %c0_201 = arith.constant 0 : index
      %c0_202 = arith.constant 0 : index
      %c0_203 = arith.constant 0 : index
      %360 = vector.load %arg11[%c0_201, %c0_202, %c0_203] : memref<1x3x128xf32, #tpu.memory_space<vmem>>, vector<1x3x128xf32>
      %361 = vector.shape_cast %360 : vector<1x3x128xf32> to vector<3x128xf32>
      %362 = vector.shape_cast %359 : vector<3x128xf32> to vector<1x3x128xf32>
      tpu.vector_store %arg11[%c0_201, %c0_202, %c0_203], %362 {strides = array<i32>} : memref<1x3x128xf32, #tpu.memory_space<vmem>>, vector<1x3x128xf32>,
    } else {
    }
    %c0 = arith.constant 0 : index
    %c0_1 = arith.constant 0 : index
    %3 = vector.load %arg10[%c0, %c0_1] : memref<8x128xf32, #tpu.memory_space<vmem>>, vector<8x128xf32>
    %cst = arith.constant 1.000000e+00 : f32
    %4 = vector.broadcast %cst : f32 to vector<8x128xf32>
    %5 = arith.subf %4, %3 : vector<8x128xf32>
    %c0_2 = arith.constant 0 : index
    %c0_3 = arith.constant 0 : index
    %6 = vector.load %arg2[%c0_2, %c0_3] : memref<8x128xf32, #tpu.memory_space<vmem>>, vector<8x128xf32>
    %c0_4 = arith.constant 0 : index
    %c0_5 = arith.constant 0 : index
    %7 = vector.load %arg6[%c0_4, %c0_5] : memref<8x128xf32, #tpu.memory_space<vmem>>, vector<8x128xf32>
    %cst_6 = arith.constant 5.000000e-01 : f32
    %8 = vector.broadcast %cst_6 : f32 to vector<8x128xf32>
    %9 = arith.cmpf ogt, %7, %8 : vector<8x128xf32>
    %cst_7 = arith.constant 1.000000e+00 : f32
    %10 = vector.broadcast %cst_7 : f32 to vector<8x128xf32>
    %11 = arith.subf %10, %6 : vector<8x128xf32>
    %12 = arith.select %9, %6, %11 : vector<8x128xi1>, vector<8x128xf32>
    %13 = math.log %12 : vector<8x128xf32>
    %cst_8 = arith.constant -1.000000e+02 : f32
    %14 = vector.broadcast %cst_8 : f32 to vector<8x128xf32>
    %15 = arith.maximumf %13, %14 : vector<8x128xf32>
    %cst_9 = arith.constant 0.000000e+00 : f32
    %16 = vector.broadcast %cst_9 : f32 to vector<8x128xf32>
    %17 = arith.subf %16, %15 : vector<8x128xf32>
    %c0_10 = arith.constant 0 : index
    %c0_11 = arith.constant 0 : index
    %18 = vector.load %arg3[%c0_10, %c0_11] : memref<8x128xf32, #tpu.memory_space<vmem>>, vector<8x128xf32>
    %c0_12 = arith.constant 0 : index
    %c0_13 = arith.constant 0 : index
    %19 = vector.load %arg7[%c0_12, %c0_13] : memref<8x128xf32, #tpu.memory_space<vmem>>, vector<8x128xf32>
    %cst_14 = arith.constant 5.000000e-01 : f32
    %20 = vector.broadcast %cst_14 : f32 to vector<8x128xf32>
    %21 = arith.cmpf ogt, %19, %20 : vector<8x128xf32>
    %cst_15 = arith.constant 1.000000e+00 : f32
    %22 = vector.broadcast %cst_15 : f32 to vector<8x128xf32>
    %23 = arith.subf %22, %18 : vector<8x128xf32>
    %24 = arith.select %21, %18, %23 : vector<8x128xi1>, vector<8x128xf32>
    %25 = math.log %24 : vector<8x128xf32>
    %cst_16 = arith.constant -1.000000e+02 : f32
    %26 = vector.broadcast %cst_16 : f32 to vector<8x128xf32>
    %27 = arith.maximumf %25, %26 : vector<8x128xf32>
    %cst_17 = arith.constant 0.000000e+00 : f32
    %28 = vector.broadcast %cst_17 : f32 to vector<8x128xf32>
    %29 = arith.subf %28, %27 : vector<8x128xf32>
    %30 = arith.addf %17, %29 : vector<8x128xf32>
    %31 = arith.mulf %30, %5 : vector<8x128xf32>
    %cst_18 = arith.constant dense<0.000000e+00> : vector<128xf32>
    %32 = vector.multi_reduction <add>, %31, %cst_18 [0] : vector<8x128xf32> to vector<128xf32>
    %33 = vector.shape_cast %32 : vector<128xf32> to vector<1x128xf32>
    %cst_19 = arith.constant dense<0.000000e+00> : vector<128xf32>
    %34 = vector.multi_reduction <add>, %5, %cst_19 [0] : vector<8x128xf32> to vector<128xf32>
    %35 = vector.shape_cast %34 : vector<128xf32> to vector<1x128xf32>
    %cst_20 = arith.constant 0.000000e+00 : f32
    %36 = vector.broadcast %cst_20 : f32 to vector<1x128xf32>
    %c0_21 = arith.constant 0 : index
    %c0_22 = arith.constant 0 : index
    %c0_23 = arith.constant 0 : index
    %37 = vector.load %arg4[%c0_21, %c0_22, %c0_23] : memref<8x128x8xf32, #tpu.memory_space<vmem>>, vector<1x128x8xf32>
    %38 = vector.shape_cast %37 : vector<1x128x8xf32> to vector<128x8xf32>
    %39 = tpu.transpose %38, [1, 0] : vector<128x8xf32> -> vector<8x128xf32>
    %c0_24 = arith.constant 0 : index
    %c0_25 = arith.constant 0 : index
    %c0_26 = arith.constant 0 : index
    %40 = vector.load %arg5[%c0_24, %c0_25, %c0_26] : memref<8x128x8xf32, #tpu.memory_space<vmem>>, vector<1x128x8xf32>
    %41 = vector.shape_cast %40 : vector<1x128x8xf32> to vector<128x8xf32>
    %42 = tpu.transpose %41, [1, 0] : vector<128x8xf32> -> vector<8x128xf32>
    %c0_27 = arith.constant 0 : index
    %c0_28 = arith.constant 0 : index
    %c0_29 = arith.constant 0 : index
    %43 = vector.load %arg8[%c0_27, %c0_28, %c0_29] : memref<8x8x128xi8, #tpu.memory_space<vmem>>, vector<1x8x128xi8>
    %44 = vector.shape_cast %43 : vector<1x8x128xi8> to vector<8x128xi8>
    %45 = arith.sitofp %44 : vector<8x128xi8> to vector<8x128xf32>
    %cst_30 = arith.constant 5.000000e-01 : f32
    %46 = vector.broadcast %cst_30 : f32 to vector<8x128xf32>
    %47 = arith.cmpf ogt, %45, %46 : vector<8x128xf32>
    %cst_31 = arith.constant 1.000000e+00 : f32
    %48 = vector.broadcast %cst_31 : f32 to vector<8x128xf32>
    %49 = arith.subf %48, %39 : vector<8x128xf32>
    %50 = arith.select %47, %39, %49 : vector<8x128xi1>, vector<8x128xf32>
    %51 = math.log %50 : vector<8x128xf32>
    %cst_32 = arith.constant -1.000000e+02 : f32
    %52 = vector.broadcast %cst_32 : f32 to vector<8x128xf32>
    %53 = arith.maximumf %51, %52 : vector<8x128xf32>
    %cst_33 = arith.constant 0.000000e+00 : f32
    %54 = vector.broadcast %cst_33 : f32 to vector<8x128xf32>
    %55 = arith.subf %54, %53 : vector<8x128xf32>
    %c0_34 = arith.constant 0 : index
    %c0_35 = arith.constant 0 : index
    %c0_36 = arith.constant 0 : index
    %56 = vector.load %arg9[%c0_34, %c0_35, %c0_36] : memref<8x8x128xi8, #tpu.memory_space<vmem>>, vector<1x8x128xi8>
    %57 = vector.shape_cast %56 : vector<1x8x128xi8> to vector<8x128xi8>
    %58 = arith.sitofp %57 : vector<8x128xi8> to vector<8x128xf32>
    %cst_37 = arith.constant 5.000000e-01 : f32
    %59 = vector.broadcast %cst_37 : f32 to vector<8x128xf32>
    %60 = arith.cmpf ogt, %58, %59 : vector<8x128xf32>
    %cst_38 = arith.constant 1.000000e+00 : f32
    %61 = vector.broadcast %cst_38 : f32 to vector<8x128xf32>
    %62 = arith.subf %61, %42 : vector<8x128xf32>
    %63 = arith.select %60, %42, %62 : vector<8x128xi1>, vector<8x128xf32>
    %64 = math.log %63 : vector<8x128xf32>
    %cst_39 = arith.constant -1.000000e+02 : f32
    %65 = vector.broadcast %cst_39 : f32 to vector<8x128xf32>
    %66 = arith.maximumf %64, %65 : vector<8x128xf32>
    %cst_40 = arith.constant 0.000000e+00 : f32
    %67 = vector.broadcast %cst_40 : f32 to vector<8x128xf32>
    %68 = arith.subf %67, %66 : vector<8x128xf32>
    %69 = arith.addf %55, %68 : vector<8x128xf32>
    %cst_41 = arith.constant dense<0.000000e+00> : vector<128xf32>
    %70 = vector.multi_reduction <add>, %69, %cst_41 [0] : vector<8x128xf32> to vector<128xf32>
    %71 = vector.shape_cast %70 : vector<128xf32> to vector<1x128xf32>
    %72 = vector.extract_strided_slice %5 {offsets = [0, 0], sizes = [1, 128], strides = [1, 1]} : vector<8x128xf32> to vector<1x128xf32>
    %73 = arith.mulf %71, %72 : vector<1x128xf32>
    %74 = arith.addf %36, %73 : vector<1x128xf32>
    %c1 = arith.constant 1 : index
    %c0_42 = arith.constant 0 : index
    %c0_43 = arith.constant 0 : index
    %75 = vector.load %arg4[%c1, %c0_42, %c0_43] : memref<8x128x8xf32, #tpu.memory_space<vmem>>, vector<1x128x8xf32>
    %76 = vector.shape_cast %75 : vector<1x128x8xf32> to vector<128x8xf32>
    %77 = tpu.transpose %76, [1, 0] : vector<128x8xf32> -> vector<8x128xf32>
    %c1_44 = arith.constant 1 : index
    %c0_45 = arith.constant 0 : index
    %c0_46 = arith.constant 0 : index
    %78 = vector.load %arg5[%c1_44, %c0_45, %c0_46] : memref<8x128x8xf32, #tpu.memory_space<vmem>>, vector<1x128x8xf32>
    %79 = vector.shape_cast %78 : vector<1x128x8xf32> to vector<128x8xf32>
    %80 = tpu.transpose %79, [1, 0] : vector<128x8xf32> -> vector<8x128xf32>
    %c1_47 = arith.constant 1 : index
    %c0_48 = arith.constant 0 : index
    %c0_49 = arith.constant 0 : index
    %81 = vector.load %arg8[%c1_47, %c0_48, %c0_49] : memref<8x8x128xi8, #tpu.memory_space<vmem>>, vector<1x8x128xi8>
    %82 = vector.shape_cast %81 : vector<1x8x128xi8> to vector<8x128xi8>
    %83 = arith.sitofp %82 : vector<8x128xi8> to vector<8x128xf32>
    %cst_50 = arith.constant 5.000000e-01 : f32
    %84 = vector.broadcast %cst_50 : f32 to vector<8x128xf32>
    %85 = arith.cmpf ogt, %83, %84 : vector<8x128xf32>
    %cst_51 = arith.constant 1.000000e+00 : f32
    %86 = vector.broadcast %cst_51 : f32 to vector<8x128xf32>
    %87 = arith.subf %86, %77 : vector<8x128xf32>
    %88 = arith.select %85, %77, %87 : vector<8x128xi1>, vector<8x128xf32>
    %89 = math.log %88 : vector<8x128xf32>
    %cst_52 = arith.constant -1.000000e+02 : f32
    %90 = vector.broadcast %cst_52 : f32 to vector<8x128xf32>
    %91 = arith.maximumf %89, %90 : vector<8x128xf32>
    %cst_53 = arith.constant 0.000000e+00 : f32
    %92 = vector.broadcast %cst_53 : f32 to vector<8x128xf32>
    %93 = arith.subf %92, %91 : vector<8x128xf32>
    %c1_54 = arith.constant 1 : index
    %c0_55 = arith.constant 0 : index
    %c0_56 = arith.constant 0 : index
    %94 = vector.load %arg9[%c1_54, %c0_55, %c0_56] : memref<8x8x128xi8, #tpu.memory_space<vmem>>, vector<1x8x128xi8>
    %95 = vector.shape_cast %94 : vector<1x8x128xi8> to vector<8x128xi8>
    %96 = arith.sitofp %95 : vector<8x128xi8> to vector<8x128xf32>
    %cst_57 = arith.constant 5.000000e-01 : f32
    %97 = vector.broadcast %cst_57 : f32 to vector<8x128xf32>
    %98 = arith.cmpf ogt, %96, %97 : vector<8x128xf32>
    %cst_58 = arith.constant 1.000000e+00 : f32
    %99 = vector.broadcast %cst_58 : f32 to vector<8x128xf32>
    %100 = arith.subf %99, %80 : vector<8x128xf32>
    %101 = arith.select %98, %80, %100 : vector<8x128xi1>, vector<8x128xf32>
    %102 = math.log %101 : vector<8x128xf32>
    %cst_59 = arith.constant -1.000000e+02 : f32
    %103 = vector.broadcast %cst_59 : f32 to vector<8x128xf32>
    %104 = arith.maximumf %102, %103 : vector<8x128xf32>
    %cst_60 = arith.constant 0.000000e+00 : f32
    %105 = vector.broadcast %cst_60 : f32 to vector<8x128xf32>
    %106 = arith.subf %105, %104 : vector<8x128xf32>
    %107 = arith.addf %93, %106 : vector<8x128xf32>
    %cst_61 = arith.constant dense<0.000000e+00> : vector<128xf32>
    %108 = vector.multi_reduction <add>, %107, %cst_61 [0] : vector<8x128xf32> to vector<128xf32>
    %109 = vector.shape_cast %108 : vector<128xf32> to vector<1x128xf32>
    %110 = vector.extract_strided_slice %5 {offsets = [1, 0], sizes = [1, 128], strides = [1, 1]} : vector<8x128xf32> to vector<1x128xf32>
    %111 = arith.mulf %109, %110 : vector<1x128xf32>
    %112 = arith.addf %74, %111 : vector<1x128xf32>
    %c2 = arith.constant 2 : index
    %c0_62 = arith.constant 0 : index
    %c0_63 = arith.constant 0 : index
    %113 = vector.load %arg4[%c2, %c0_62, %c0_63] : memref<8x128x8xf32, #tpu.memory_space<vmem>>, vector<1x128x8xf32>
    %114 = vector.shape_cast %113 : vector<1x128x8xf32> to vector<128x8xf32>
    %115 = tpu.transpose %114, [1, 0] : vector<128x8xf32> -> vector<8x128xf32>
    %c2_64 = arith.constant 2 : index
    %c0_65 = arith.constant 0 : index
    %c0_66 = arith.constant 0 : index
    %116 = vector.load %arg5[%c2_64, %c0_65, %c0_66] : memref<8x128x8xf32, #tpu.memory_space<vmem>>, vector<1x128x8xf32>
    %117 = vector.shape_cast %116 : vector<1x128x8xf32> to vector<128x8xf32>
    %118 = tpu.transpose %117, [1, 0] : vector<128x8xf32> -> vector<8x128xf32>
    %c2_67 = arith.constant 2 : index
    %c0_68 = arith.constant 0 : index
    %c0_69 = arith.constant 0 : index
    %119 = vector.load %arg8[%c2_67, %c0_68, %c0_69] : memref<8x8x128xi8, #tpu.memory_space<vmem>>, vector<1x8x128xi8>
    %120 = vector.shape_cast %119 : vector<1x8x128xi8> to vector<8x128xi8>
    %121 = arith.sitofp %120 : vector<8x128xi8> to vector<8x128xf32>
    %cst_70 = arith.constant 5.000000e-01 : f32
    %122 = vector.broadcast %cst_70 : f32 to vector<8x128xf32>
    %123 = arith.cmpf ogt, %121, %122 : vector<8x128xf32>
    %cst_71 = arith.constant 1.000000e+00 : f32
    %124 = vector.broadcast %cst_71 : f32 to vector<8x128xf32>
    %125 = arith.subf %124, %115 : vector<8x128xf32>
    %126 = arith.select %123, %115, %125 : vector<8x128xi1>, vector<8x128xf32>
    %127 = math.log %126 : vector<8x128xf32>
    %cst_72 = arith.constant -1.000000e+02 : f32
    %128 = vector.broadcast %cst_72 : f32 to vector<8x128xf32>
    %129 = arith.maximumf %127, %128 : vector<8x128xf32>
    %cst_73 = arith.constant 0.000000e+00 : f32
    %130 = vector.broadcast %cst_73 : f32 to vector<8x128xf32>
    %131 = arith.subf %130, %129 : vector<8x128xf32>
    %c2_74 = arith.constant 2 : index
    %c0_75 = arith.constant 0 : index
    %c0_76 = arith.constant 0 : index
    %132 = vector.load %arg9[%c2_74, %c0_75, %c0_76] : memref<8x8x128xi8, #tpu.memory_space<vmem>>, vector<1x8x128xi8>
    %133 = vector.shape_cast %132 : vector<1x8x128xi8> to vector<8x128xi8>
    %134 = arith.sitofp %133 : vector<8x128xi8> to vector<8x128xf32>
    %cst_77 = arith.constant 5.000000e-01 : f32
    %135 = vector.broadcast %cst_77 : f32 to vector<8x128xf32>
    %136 = arith.cmpf ogt, %134, %135 : vector<8x128xf32>
    %cst_78 = arith.constant 1.000000e+00 : f32
    %137 = vector.broadcast %cst_78 : f32 to vector<8x128xf32>
    %138 = arith.subf %137, %118 : vector<8x128xf32>
    %139 = arith.select %136, %118, %138 : vector<8x128xi1>, vector<8x128xf32>
    %140 = math.log %139 : vector<8x128xf32>
    %cst_79 = arith.constant -1.000000e+02 : f32
    %141 = vector.broadcast %cst_79 : f32 to vector<8x128xf32>
    %142 = arith.maximumf %140, %141 : vector<8x128xf32>
    %cst_80 = arith.constant 0.000000e+00 : f32
    %143 = vector.broadcast %cst_80 : f32 to vector<8x128xf32>
    %144 = arith.subf %143, %142 : vector<8x128xf32>
    %145 = arith.addf %131, %144 : vector<8x128xf32>
    %cst_81 = arith.constant dense<0.000000e+00> : vector<128xf32>
    %146 = vector.multi_reduction <add>, %145, %cst_81 [0] : vector<8x128xf32> to vector<128xf32>
    %147 = vector.shape_cast %146 : vector<128xf32> to vector<1x128xf32>
    %148 = vector.extract_strided_slice %5 {offsets = [2, 0], sizes = [1, 128], strides = [1, 1]} : vector<8x128xf32> to vector<1x128xf32>
    %149 = arith.mulf %147, %148 : vector<1x128xf32>
    %150 = arith.addf %112, %149 : vector<1x128xf32>
    %c3 = arith.constant 3 : index
    %c0_82 = arith.constant 0 : index
    %c0_83 = arith.constant 0 : index
    %151 = vector.load %arg4[%c3, %c0_82, %c0_83] : memref<8x128x8xf32, #tpu.memory_space<vmem>>, vector<1x128x8xf32>
    %152 = vector.shape_cast %151 : vector<1x128x8xf32> to vector<128x8xf32>
    %153 = tpu.transpose %152, [1, 0] : vector<128x8xf32> -> vector<8x128xf32>
    %c3_84 = arith.constant 3 : index
    %c0_85 = arith.constant 0 : index
    %c0_86 = arith.constant 0 : index
    %154 = vector.load %arg5[%c3_84, %c0_85, %c0_86] : memref<8x128x8xf32, #tpu.memory_space<vmem>>, vector<1x128x8xf32>
    %155 = vector.shape_cast %154 : vector<1x128x8xf32> to vector<128x8xf32>
    %156 = tpu.transpose %155, [1, 0] : vector<128x8xf32> -> vector<8x128xf32>
    %c3_87 = arith.constant 3 : index
    %c0_88 = arith.constant 0 : index
    %c0_89 = arith.constant 0 : index
    %157 = vector.load %arg8[%c3_87, %c0_88, %c0_89] : memref<8x8x128xi8, #tpu.memory_space<vmem>>, vector<1x8x128xi8>
    %158 = vector.shape_cast %157 : vector<1x8x128xi8> to vector<8x128xi8>
    %159 = arith.sitofp %158 : vector<8x128xi8> to vector<8x128xf32>
    %cst_90 = arith.constant 5.000000e-01 : f32
    %160 = vector.broadcast %cst_90 : f32 to vector<8x128xf32>
    %161 = arith.cmpf ogt, %159, %160 : vector<8x128xf32>
    %cst_91 = arith.constant 1.000000e+00 : f32
    %162 = vector.broadcast %cst_91 : f32 to vector<8x128xf32>
    %163 = arith.subf %162, %153 : vector<8x128xf32>
    %164 = arith.select %161, %153, %163 : vector<8x128xi1>, vector<8x128xf32>
    %165 = math.log %164 : vector<8x128xf32>
    %cst_92 = arith.constant -1.000000e+02 : f32
    %166 = vector.broadcast %cst_92 : f32 to vector<8x128xf32>
    %167 = arith.maximumf %165, %166 : vector<8x128xf32>
    %cst_93 = arith.constant 0.000000e+00 : f32
    %168 = vector.broadcast %cst_93 : f32 to vector<8x128xf32>
    %169 = arith.subf %168, %167 : vector<8x128xf32>
    %c3_94 = arith.constant 3 : index
    %c0_95 = arith.constant 0 : index
    %c0_96 = arith.constant 0 : index
    %170 = vector.load %arg9[%c3_94, %c0_95, %c0_96] : memref<8x8x128xi8, #tpu.memory_space<vmem>>, vector<1x8x128xi8>
    %171 = vector.shape_cast %170 : vector<1x8x128xi8> to vector<8x128xi8>
    %172 = arith.sitofp %171 : vector<8x128xi8> to vector<8x128xf32>
    %cst_97 = arith.constant 5.000000e-01 : f32
    %173 = vector.broadcast %cst_97 : f32 to vector<8x128xf32>
    %174 = arith.cmpf ogt, %172, %173 : vector<8x128xf32>
    %cst_98 = arith.constant 1.000000e+00 : f32
    %175 = vector.broadcast %cst_98 : f32 to vector<8x128xf32>
    %176 = arith.subf %175, %156 : vector<8x128xf32>
    %177 = arith.select %174, %156, %176 : vector<8x128xi1>, vector<8x128xf32>
    %178 = math.log %177 : vector<8x128xf32>
    %cst_99 = arith.constant -1.000000e+02 : f32
    %179 = vector.broadcast %cst_99 : f32 to vector<8x128xf32>
    %180 = arith.maximumf %178, %179 : vector<8x128xf32>
    %cst_100 = arith.constant 0.000000e+00 : f32
    %181 = vector.broadcast %cst_100 : f32 to vector<8x128xf32>
    %182 = arith.subf %181, %180 : vector<8x128xf32>
    %183 = arith.addf %169, %182 : vector<8x128xf32>
    %cst_101 = arith.constant dense<0.000000e+00> : vector<128xf32>
    %184 = vector.multi_reduction <add>, %183, %cst_101 [0] : vector<8x128xf32> to vector<128xf32>
    %185 = vector.shape_cast %184 : vector<128xf32> to vector<1x128xf32>
    %186 = vector.extract_strided_slice %5 {offsets = [3, 0], sizes = [1, 128], strides = [1, 1]} : vector<8x128xf32> to vector<1x128xf32>
    %187 = arith.mulf %185, %186 : vector<1x128xf32>
    %188 = arith.addf %150, %187 : vector<1x128xf32>
    %c4 = arith.constant 4 : index
    %c0_102 = arith.constant 0 : index
    %c0_103 = arith.constant 0 : index
    %189 = vector.load %arg4[%c4, %c0_102, %c0_103] : memref<8x128x8xf32, #tpu.memory_space<vmem>>, vector<1x128x8xf32>
    %190 = vector.shape_cast %189 : vector<1x128x8xf32> to vector<128x8xf32>
    %191 = tpu.transpose %190, [1, 0] : vector<128x8xf32> -> vector<8x128xf32>
    %c4_104 = arith.constant 4 : index
    %c0_105 = arith.constant 0 : index
    %c0_106 = arith.constant 0 : index
    %192 = vector.load %arg5[%c4_104, %c0_105, %c0_106] : memref<8x128x8xf32, #tpu.memory_space<vmem>>, vector<1x128x8xf32>
    %193 = vector.shape_cast %192 : vector<1x128x8xf32> to vector<128x8xf32>
    %194 = tpu.transpose %193, [1, 0] : vector<128x8xf32> -> vector<8x128xf32>
    %c4_107 = arith.constant 4 : index
    %c0_108 = arith.constant 0 : index
    %c0_109 = arith.constant 0 : index
    %195 = vector.load %arg8[%c4_107, %c0_108, %c0_109] : memref<8x8x128xi8, #tpu.memory_space<vmem>>, vector<1x8x128xi8>
    %196 = vector.shape_cast %195 : vector<1x8x128xi8> to vector<8x128xi8>
    %197 = arith.sitofp %196 : vector<8x128xi8> to vector<8x128xf32>
    %cst_110 = arith.constant 5.000000e-01 : f32
    %198 = vector.broadcast %cst_110 : f32 to vector<8x128xf32>
    %199 = arith.cmpf ogt, %197, %198 : vector<8x128xf32>
    %cst_111 = arith.constant 1.000000e+00 : f32
    %200 = vector.broadcast %cst_111 : f32 to vector<8x128xf32>
    %201 = arith.subf %200, %191 : vector<8x128xf32>
    %202 = arith.select %199, %191, %201 : vector<8x128xi1>, vector<8x128xf32>
    %203 = math.log %202 : vector<8x128xf32>
    %cst_112 = arith.constant -1.000000e+02 : f32
    %204 = vector.broadcast %cst_112 : f32 to vector<8x128xf32>
    %205 = arith.maximumf %203, %204 : vector<8x128xf32>
    %cst_113 = arith.constant 0.000000e+00 : f32
    %206 = vector.broadcast %cst_113 : f32 to vector<8x128xf32>
    %207 = arith.subf %206, %205 : vector<8x128xf32>
    %c4_114 = arith.constant 4 : index
    %c0_115 = arith.constant 0 : index
    %c0_116 = arith.constant 0 : index
    %208 = vector.load %arg9[%c4_114, %c0_115, %c0_116] : memref<8x8x128xi8, #tpu.memory_space<vmem>>, vector<1x8x128xi8>
    %209 = vector.shape_cast %208 : vector<1x8x128xi8> to vector<8x128xi8>
    %210 = arith.sitofp %209 : vector<8x128xi8> to vector<8x128xf32>
    %cst_117 = arith.constant 5.000000e-01 : f32
    %211 = vector.broadcast %cst_117 : f32 to vector<8x128xf32>
    %212 = arith.cmpf ogt, %210, %211 : vector<8x128xf32>
    %cst_118 = arith.constant 1.000000e+00 : f32
    %213 = vector.broadcast %cst_118 : f32 to vector<8x128xf32>
    %214 = arith.subf %213, %194 : vector<8x128xf32>
    %215 = arith.select %212, %194, %214 : vector<8x128xi1>, vector<8x128xf32>
    %216 = math.log %215 : vector<8x128xf32>
    %cst_119 = arith.constant -1.000000e+02 : f32
    %217 = vector.broadcast %cst_119 : f32 to vector<8x128xf32>
    %218 = arith.maximumf %216, %217 : vector<8x128xf32>
    %cst_120 = arith.constant 0.000000e+00 : f32
    %219 = vector.broadcast %cst_120 : f32 to vector<8x128xf32>
    %220 = arith.subf %219, %218 : vector<8x128xf32>
    %221 = arith.addf %207, %220 : vector<8x128xf32>
    %cst_121 = arith.constant dense<0.000000e+00> : vector<128xf32>
    %222 = vector.multi_reduction <add>, %221, %cst_121 [0] : vector<8x128xf32> to vector<128xf32>
    %223 = vector.shape_cast %222 : vector<128xf32> to vector<1x128xf32>
    %224 = vector.extract_strided_slice %5 {offsets = [4, 0], sizes = [1, 128], strides = [1, 1]} : vector<8x128xf32> to vector<1x128xf32>
    %225 = arith.mulf %223, %224 : vector<1x128xf32>
    %226 = arith.addf %188, %225 : vector<1x128xf32>
    %c5 = arith.constant 5 : index
    %c0_122 = arith.constant 0 : index
    %c0_123 = arith.constant 0 : index
    %227 = vector.load %arg4[%c5, %c0_122, %c0_123] : memref<8x128x8xf32, #tpu.memory_space<vmem>>, vector<1x128x8xf32>
    %228 = vector.shape_cast %227 : vector<1x128x8xf32> to vector<128x8xf32>
    %229 = tpu.transpose %228, [1, 0] : vector<128x8xf32> -> vector<8x128xf32>
    %c5_124 = arith.constant 5 : index
    %c0_125 = arith.constant 0 : index
    %c0_126 = arith.constant 0 : index
    %230 = vector.load %arg5[%c5_124, %c0_125, %c0_126] : memref<8x128x8xf32, #tpu.memory_space<vmem>>, vector<1x128x8xf32>
    %231 = vector.shape_cast %230 : vector<1x128x8xf32> to vector<128x8xf32>
    %232 = tpu.transpose %231, [1, 0] : vector<128x8xf32> -> vector<8x128xf32>
    %c5_127 = arith.constant 5 : index
    %c0_128 = arith.constant 0 : index
    %c0_129 = arith.constant 0 : index
    %233 = vector.load %arg8[%c5_127, %c0_128, %c0_129] : memref<8x8x128xi8, #tpu.memory_space<vmem>>, vector<1x8x128xi8>
    %234 = vector.shape_cast %233 : vector<1x8x128xi8> to vector<8x128xi8>
    %235 = arith.sitofp %234 : vector<8x128xi8> to vector<8x128xf32>
    %cst_130 = arith.constant 5.000000e-01 : f32
    %236 = vector.broadcast %cst_130 : f32 to vector<8x128xf32>
    %237 = arith.cmpf ogt, %235, %236 : vector<8x128xf32>
    %cst_131 = arith.constant 1.000000e+00 : f32
    %238 = vector.broadcast %cst_131 : f32 to vector<8x128xf32>
    %239 = arith.subf %238, %229 : vector<8x128xf32>
    %240 = arith.select %237, %229, %239 : vector<8x128xi1>, vector<8x128xf32>
    %241 = math.log %240 : vector<8x128xf32>
    %cst_132 = arith.constant -1.000000e+02 : f32
    %242 = vector.broadcast %cst_132 : f32 to vector<8x128xf32>
    %243 = arith.maximumf %241, %242 : vector<8x128xf32>
    %cst_133 = arith.constant 0.000000e+00 : f32
    %244 = vector.broadcast %cst_133 : f32 to vector<8x128xf32>
    %245 = arith.subf %244, %243 : vector<8x128xf32>
    %c5_134 = arith.constant 5 : index
    %c0_135 = arith.constant 0 : index
    %c0_136 = arith.constant 0 : index
    %246 = vector.load %arg9[%c5_134, %c0_135, %c0_136] : memref<8x8x128xi8, #tpu.memory_space<vmem>>, vector<1x8x128xi8>
    %247 = vector.shape_cast %246 : vector<1x8x128xi8> to vector<8x128xi8>
    %248 = arith.sitofp %247 : vector<8x128xi8> to vector<8x128xf32>
    %cst_137 = arith.constant 5.000000e-01 : f32
    %249 = vector.broadcast %cst_137 : f32 to vector<8x128xf32>
    %250 = arith.cmpf ogt, %248, %249 : vector<8x128xf32>
    %cst_138 = arith.constant 1.000000e+00 : f32
    %251 = vector.broadcast %cst_138 : f32 to vector<8x128xf32>
    %252 = arith.subf %251, %232 : vector<8x128xf32>
    %253 = arith.select %250, %232, %252 : vector<8x128xi1>, vector<8x128xf32>
    %254 = math.log %253 : vector<8x128xf32>
    %cst_139 = arith.constant -1.000000e+02 : f32
    %255 = vector.broadcast %cst_139 : f32 to vector<8x128xf32>
    %256 = arith.maximumf %254, %255 : vector<8x128xf32>
    %cst_140 = arith.constant 0.000000e+00 : f32
    %257 = vector.broadcast %cst_140 : f32 to vector<8x128xf32>
    %258 = arith.subf %257, %256 : vector<8x128xf32>
    %259 = arith.addf %245, %258 : vector<8x128xf32>
    %cst_141 = arith.constant dense<0.000000e+00> : vector<128xf32>
    %260 = vector.multi_reduction <add>, %259, %cst_141 [0] : vector<8x128xf32> to vector<128xf32>
    %261 = vector.shape_cast %260 : vector<128xf32> to vector<1x128xf32>
    %262 = vector.extract_strided_slice %5 {offsets = [5, 0], sizes = [1, 128], strides = [1, 1]} : vector<8x128xf32> to vector<1x128xf32>
    %263 = arith.mulf %261, %262 : vector<1x128xf32>
    %264 = arith.addf %226, %263 : vector<1x128xf32>
    %c6 = arith.constant 6 : index
    %c0_142 = arith.constant 0 : index
    %c0_143 = arith.constant 0 : index
    %265 = vector.load %arg4[%c6, %c0_142, %c0_143] : memref<8x128x8xf32, #tpu.memory_space<vmem>>, vector<1x128x8xf32>
    %266 = vector.shape_cast %265 : vector<1x128x8xf32> to vector<128x8xf32>
    %267 = tpu.transpose %266, [1, 0] : vector<128x8xf32> -> vector<8x128xf32>
    %c6_144 = arith.constant 6 : index
    %c0_145 = arith.constant 0 : index
    %c0_146 = arith.constant 0 : index
    %268 = vector.load %arg5[%c6_144, %c0_145, %c0_146] : memref<8x128x8xf32, #tpu.memory_space<vmem>>, vector<1x128x8xf32>
    %269 = vector.shape_cast %268 : vector<1x128x8xf32> to vector<128x8xf32>
    %270 = tpu.transpose %269, [1, 0] : vector<128x8xf32> -> vector<8x128xf32>
    %c6_147 = arith.constant 6 : index
    %c0_148 = arith.constant 0 : index
    %c0_149 = arith.constant 0 : index
    %271 = vector.load %arg8[%c6_147, %c0_148, %c0_149] : memref<8x8x128xi8, #tpu.memory_space<vmem>>, vector<1x8x128xi8>
    %272 = vector.shape_cast %271 : vector<1x8x128xi8> to vector<8x128xi8>
    %273 = arith.sitofp %272 : vector<8x128xi8> to vector<8x128xf32>
    %cst_150 = arith.constant 5.000000e-01 : f32
    %274 = vector.broadcast %cst_150 : f32 to vector<8x128xf32>
    %275 = arith.cmpf ogt, %273, %274 : vector<8x128xf32>
    %cst_151 = arith.constant 1.000000e+00 : f32
    %276 = vector.broadcast %cst_151 : f32 to vector<8x128xf32>
    %277 = arith.subf %276, %267 : vector<8x128xf32>
    %278 = arith.select %275, %267, %277 : vector<8x128xi1>, vector<8x128xf32>
    %279 = math.log %278 : vector<8x128xf32>
    %cst_152 = arith.constant -1.000000e+02 : f32
    %280 = vector.broadcast %cst_152 : f32 to vector<8x128xf32>
    %281 = arith.maximumf %279, %280 : vector<8x128xf32>
    %cst_153 = arith.constant 0.000000e+00 : f32
    %282 = vector.broadcast %cst_153 : f32 to vector<8x128xf32>
    %283 = arith.subf %282, %281 : vector<8x128xf32>
    %c6_154 = arith.constant 6 : index
    %c0_155 = arith.constant 0 : index
    %c0_156 = arith.constant 0 : index
    %284 = vector.load %arg9[%c6_154, %c0_155, %c0_156] : memref<8x8x128xi8, #tpu.memory_space<vmem>>, vector<1x8x128xi8>
    %285 = vector.shape_cast %284 : vector<1x8x128xi8> to vector<8x128xi8>
    %286 = arith.sitofp %285 : vector<8x128xi8> to vector<8x128xf32>
    %cst_157 = arith.constant 5.000000e-01 : f32
    %287 = vector.broadcast %cst_157 : f32 to vector<8x128xf32>
    %288 = arith.cmpf ogt, %286, %287 : vector<8x128xf32>
    %cst_158 = arith.constant 1.000000e+00 : f32
    %289 = vector.broadcast %cst_158 : f32 to vector<8x128xf32>
    %290 = arith.subf %289, %270 : vector<8x128xf32>
    %291 = arith.select %288, %270, %290 : vector<8x128xi1>, vector<8x128xf32>
    %292 = math.log %291 : vector<8x128xf32>
    %cst_159 = arith.constant -1.000000e+02 : f32
    %293 = vector.broadcast %cst_159 : f32 to vector<8x128xf32>
    %294 = arith.maximumf %292, %293 : vector<8x128xf32>
    %cst_160 = arith.constant 0.000000e+00 : f32
    %295 = vector.broadcast %cst_160 : f32 to vector<8x128xf32>
    %296 = arith.subf %295, %294 : vector<8x128xf32>
    %297 = arith.addf %283, %296 : vector<8x128xf32>
    %cst_161 = arith.constant dense<0.000000e+00> : vector<128xf32>
    %298 = vector.multi_reduction <add>, %297, %cst_161 [0] : vector<8x128xf32> to vector<128xf32>
    %299 = vector.shape_cast %298 : vector<128xf32> to vector<1x128xf32>
    %300 = vector.extract_strided_slice %5 {offsets = [6, 0], sizes = [1, 128], strides = [1, 1]} : vector<8x128xf32> to vector<1x128xf32>
    %301 = arith.mulf %299, %300 : vector<1x128xf32>
    %302 = arith.addf %264, %301 : vector<1x128xf32>
    %c7 = arith.constant 7 : index
    %c0_162 = arith.constant 0 : index
    %c0_163 = arith.constant 0 : index
    %303 = vector.load %arg4[%c7, %c0_162, %c0_163] : memref<8x128x8xf32, #tpu.memory_space<vmem>>, vector<1x128x8xf32>
    %304 = vector.shape_cast %303 : vector<1x128x8xf32> to vector<128x8xf32>
    %305 = tpu.transpose %304, [1, 0] : vector<128x8xf32> -> vector<8x128xf32>
    %c7_164 = arith.constant 7 : index
    %c0_165 = arith.constant 0 : index
    %c0_166 = arith.constant 0 : index
    %306 = vector.load %arg5[%c7_164, %c0_165, %c0_166] : memref<8x128x8xf32, #tpu.memory_space<vmem>>, vector<1x128x8xf32>
    %307 = vector.shape_cast %306 : vector<1x128x8xf32> to vector<128x8xf32>
    %308 = tpu.transpose %307, [1, 0] : vector<128x8xf32> -> vector<8x128xf32>
    %c7_167 = arith.constant 7 : index
    %c0_168 = arith.constant 0 : index
    %c0_169 = arith.constant 0 : index
    %309 = vector.load %arg8[%c7_167, %c0_168, %c0_169] : memref<8x8x128xi8, #tpu.memory_space<vmem>>, vector<1x8x128xi8>
    %310 = vector.shape_cast %309 : vector<1x8x128xi8> to vector<8x128xi8>
    %311 = arith.sitofp %310 : vector<8x128xi8> to vector<8x128xf32>
    %cst_170 = arith.constant 5.000000e-01 : f32
    %312 = vector.broadcast %cst_170 : f32 to vector<8x128xf32>
    %313 = arith.cmpf ogt, %311, %312 : vector<8x128xf32>
    %cst_171 = arith.constant 1.000000e+00 : f32
    %314 = vector.broadcast %cst_171 : f32 to vector<8x128xf32>
    %315 = arith.subf %314, %305 : vector<8x128xf32>
    %316 = arith.select %313, %305, %315 : vector<8x128xi1>, vector<8x128xf32>
    %317 = math.log %316 : vector<8x128xf32>
    %cst_172 = arith.constant -1.000000e+02 : f32
    %318 = vector.broadcast %cst_172 : f32 to vector<8x128xf32>
    %319 = arith.maximumf %317, %318 : vector<8x128xf32>
    %cst_173 = arith.constant 0.000000e+00 : f32
    %320 = vector.broadcast %cst_173 : f32 to vector<8x128xf32>
    %321 = arith.subf %320, %319 : vector<8x128xf32>
    %c7_174 = arith.constant 7 : index
    %c0_175 = arith.constant 0 : index
    %c0_176 = arith.constant 0 : index
    %322 = vector.load %arg9[%c7_174, %c0_175, %c0_176] : memref<8x8x128xi8, #tpu.memory_space<vmem>>, vector<1x8x128xi8>
    %323 = vector.shape_cast %322 : vector<1x8x128xi8> to vector<8x128xi8>
    %324 = arith.sitofp %323 : vector<8x128xi8> to vector<8x128xf32>
    %cst_177 = arith.constant 5.000000e-01 : f32
    %325 = vector.broadcast %cst_177 : f32 to vector<8x128xf32>
    %326 = arith.cmpf ogt, %324, %325 : vector<8x128xf32>
    %cst_178 = arith.constant 1.000000e+00 : f32
    %327 = vector.broadcast %cst_178 : f32 to vector<8x128xf32>
    %328 = arith.subf %327, %308 : vector<8x128xf32>
    %329 = arith.select %326, %308, %328 : vector<8x128xi1>, vector<8x128xf32>
    %330 = math.log %329 : vector<8x128xf32>
    %cst_179 = arith.constant -1.000000e+02 : f32
    %331 = vector.broadcast %cst_179 : f32 to vector<8x128xf32>
    %332 = arith.maximumf %330, %331 : vector<8x128xf32>
    %cst_180 = arith.constant 0.000000e+00 : f32
    %333 = vector.broadcast %cst_180 : f32 to vector<8x128xf32>
    %334 = arith.subf %333, %332 : vector<8x128xf32>
    %335 = arith.addf %321, %334 : vector<8x128xf32>
    %cst_181 = arith.constant dense<0.000000e+00> : vector<128xf32>
    %336 = vector.multi_reduction <add>, %335, %cst_181 [0] : vector<8x128xf32> to vector<128xf32>
    %337 = vector.shape_cast %336 : vector<128xf32> to vector<1x128xf32>
    %338 = vector.extract_strided_slice %5 {offsets = [7, 0], sizes = [1, 128], strides = [1, 1]} : vector<8x128xf32> to vector<1x128xf32>
    %339 = arith.mulf %337, %338 : vector<1x128xf32>
    %340 = arith.addf %302, %339 : vector<1x128xf32>
    %c0_182 = arith.constant 0 : index
    %c0_183 = arith.constant 0 : index
    %c0_184 = arith.constant 0 : index
    %341 = vector.load %arg11[%c0_182, %c0_183, %c0_184] : memref<1x3x128xf32, #tpu.memory_space<vmem>>, vector<1x1x128xf32>
    %342 = vector.shape_cast %341 : vector<1x1x128xf32> to vector<1x128xf32>
    %343 = arith.addf %342, %33 : vector<1x128xf32>
    %c0_185 = arith.constant 0 : index
    %c0_186 = arith.constant 0 : index
    %c0_187 = arith.constant 0 : index
    %344 = vector.load %arg11[%c0_185, %c0_186, %c0_187] : memref<1x3x128xf32, #tpu.memory_space<vmem>>, vector<1x1x128xf32>
    %345 = vector.shape_cast %344 : vector<1x1x128xf32> to vector<1x128xf32>
    %346 = vector.shape_cast %343 : vector<1x128xf32> to vector<1x1x128xf32>
    tpu.vector_store %arg11[%c0_185, %c0_186, %c0_187], %346 {strides = array<i32>} : memref<1x3x128xf32, #tpu.memory_space<vmem>>, vector<1x1x128xf32>,
    %c0_188 = arith.constant 0 : index
    %c1_189 = arith.constant 1 : index
    %c0_190 = arith.constant 0 : index
    %347 = vector.load %arg11[%c0_188, %c1_189, %c0_190] : memref<1x3x128xf32, #tpu.memory_space<vmem>>, vector<1x1x128xf32>
    %348 = vector.shape_cast %347 : vector<1x1x128xf32> to vector<1x128xf32>
    %349 = arith.addf %348, %340 : vector<1x128xf32>
    %c0_191 = arith.constant 0 : index
    %c1_192 = arith.constant 1 : index
    %c0_193 = arith.constant 0 : index
    %350 = vector.load %arg11[%c0_191, %c1_192, %c0_193] : memref<1x3x128xf32, #tpu.memory_space<vmem>>, vector<1x1x128xf32>
    %351 = vector.shape_cast %350 : vector<1x1x128xf32> to vector<1x128xf32>
    %352 = vector.shape_cast %349 : vector<1x128xf32> to vector<1x1x128xf32>
    tpu.vector_store %arg11[%c0_191, %c1_192, %c0_193], %352 {strides = array<i32>} : memref<1x3x128xf32, #tpu.memory_space<vmem>>, vector<1x1x128xf32>,
    %c0_194 = arith.constant 0 : index
    %c2_195 = arith.constant 2 : index
    %c0_196 = arith.constant 0 : index
    %353 = vector.load %arg11[%c0_194, %c2_195, %c0_196] : memref<1x3x128xf32, #tpu.memory_space<vmem>>, vector<1x1x128xf32>
    %354 = vector.shape_cast %353 : vector<1x1x128xf32> to vector<1x128xf32>
    %355 = arith.addf %354, %35 : vector<1x128xf32>
    %c0_197 = arith.constant 0 : index
    %c2_198 = arith.constant 2 : index
    %c0_199 = arith.constant 0 : index
    %356 = vector.load %arg11[%c0_197, %c2_198, %c0_199] : memref<1x3x128xf32, #tpu.memory_space<vmem>>, vector<1x1x128xf32>
    %357 = vector.shape_cast %356 : vector<1x1x128xf32> to vector<1x128xf32>
    %358 = vector.shape_cast %355 : vector<1x128xf32> to vector<1x1x128xf32>
    tpu.vector_store %arg11[%c0_197, %c2_198, %c0_199], %358 {strides = array<i32>} : memref<1x3x128xf32, #tpu.memory_space<vmem>>, vector<1x1x128xf32>,
    return
  }
  func.func @transform_0(%arg0: i32, %arg1: i32) -> (i32, i32) {
    %c1_i32 = arith.constant 1 : i32
    %0 = arith.muli %arg0, %c1_i32 : i32
    %1 = arith.addi %0, %arg1 : i32
    %c0_i32 = arith.constant 0 : i32
    %c0_i32_0 = arith.constant 0 : i32
    return %1, %c0_i32 : i32, i32
  }
  func.func @transform_1(%arg0: i32, %arg1: i32) -> (i32, i32) {
    %c1_i32 = arith.constant 1 : i32
    %0 = arith.muli %arg0, %c1_i32 : i32
    %1 = arith.addi %0, %arg1 : i32
    %c0_i32 = arith.constant 0 : i32
    %c0_i32_0 = arith.constant 0 : i32
    return %1, %c0_i32 : i32, i32
  }
  func.func @transform_2(%arg0: i32, %arg1: i32) -> (i32, i32, i32) {
    %c1_i32 = arith.constant 1 : i32
    %0 = arith.muli %arg0, %c1_i32 : i32
    %1 = arith.addi %0, %arg1 : i32
    %c0_i32 = arith.constant 0 : i32
    %c0_i32_0 = arith.constant 0 : i32
    %c0_i32_1 = arith.constant 0 : i32
    return %1, %c0_i32, %c0_i32_0 : i32, i32, i32
  }
  func.func @transform_3(%arg0: i32, %arg1: i32) -> (i32, i32, i32) {
    %c1_i32 = arith.constant 1 : i32
    %0 = arith.muli %arg0, %c1_i32 : i32
    %1 = arith.addi %0, %arg1 : i32
    %c0_i32 = arith.constant 0 : i32
    %c0_i32_0 = arith.constant 0 : i32
    %c0_i32_1 = arith.constant 0 : i32
    return %1, %c0_i32, %c0_i32_0 : i32, i32, i32
  }
  func.func @transform_4(%arg0: i32, %arg1: i32) -> (i32, i32) {
    %c1_i32 = arith.constant 1 : i32
    %0 = arith.muli %arg0, %c1_i32 : i32
    %1 = arith.addi %0, %arg1 : i32
    %c0_i32 = arith.constant 0 : i32
    %c0_i32_0 = arith.constant 0 : i32
    return %1, %c0_i32 : i32, i32
  }
  func.func @transform_5(%arg0: i32, %arg1: i32) -> (i32, i32) {
    %c1_i32 = arith.constant 1 : i32
    %0 = arith.muli %arg0, %c1_i32 : i32
    %1 = arith.addi %0, %arg1 : i32
    %c0_i32 = arith.constant 0 : i32
    %c0_i32_0 = arith.constant 0 : i32
    return %1, %c0_i32 : i32, i32
  }
  func.func @transform_6(%arg0: i32, %arg1: i32) -> (i32, i32, i32) {
    %c1_i32 = arith.constant 1 : i32
    %0 = arith.muli %arg0, %c1_i32 : i32
    %1 = arith.addi %0, %arg1 : i32
    %c0_i32 = arith.constant 0 : i32
    %c0_i32_0 = arith.constant 0 : i32
    %c0_i32_1 = arith.constant 0 : i32
    return %1, %c0_i32, %c0_i32_0 : i32, i32, i32
  }
  func.func @transform_7(%arg0: i32, %arg1: i32) -> (i32, i32, i32) {
    %c1_i32 = arith.constant 1 : i32
    %0 = arith.muli %arg0, %c1_i32 : i32
    %1 = arith.addi %0, %arg1 : i32
    %c0_i32 = arith.constant 0 : i32
    %c0_i32_0 = arith.constant 0 : i32
    %c0_i32_1 = arith.constant 0 : i32
    return %1, %c0_i32, %c0_i32_0 : i32, i32, i32
  }
  func.func @transform_8(%arg0: i32, %arg1: i32) -> (i32, i32) {
    %c1_i32 = arith.constant 1 : i32
    %0 = arith.muli %arg0, %c1_i32 : i32
    %1 = arith.addi %0, %arg1 : i32
    %c0_i32 = arith.constant 0 : i32
    %c0_i32_0 = arith.constant 0 : i32
    return %1, %c0_i32 : i32, i32
  }
  func.func @transform_9(%arg0: i32, %arg1: i32) -> (i32, i32, i32) {
    %c0_i32 = arith.constant 0 : i32
    %c0_i32_0 = arith.constant 0 : i32
    %c0_i32_1 = arith.constant 0 : i32
    return %arg0, %c0_i32, %c0_i32_0 : i32, i32, i32
  }
}

</mosaic_0001>

<llo_original>
// kernel: tpu_custom_call.1
$region0: #{tpu_custom_call.1}
  #allocation0 [shape = 'u32[]', space=smem, size = 0x4, offset = 0x4, fixed_abs, tag = 'smem constant byte address 0x4 - core index']
  #allocation1 [shape = 'u32[144,128]{1,0:T(1,128)}', space=vmem, size = 0x12000, scoped, tag = 'internal scratch']
  %s0 = inlined_call_operand.vmem [shape: f32[8,128], index: 0, kind: input, shape index: {}]
  %s1 = inlined_call_operand.vmem [shape: f32[8,128], index: 1, kind: input, shape index: {}]
  %s2 = inlined_call_operand.vmem [shape: f32[8,128,8], index: 2, kind: input, shape index: {}]
  %s3 = inlined_call_operand.vmem [shape: f32[8,128,8], index: 3, kind: input, shape index: {}]
  %s4 = inlined_call_operand.vmem [shape: f32[8,128], index: 4, kind: input, shape index: {}]
  %s5 = inlined_call_operand.vmem [shape: f32[8,128], index: 5, kind: input, shape index: {}]
  %s6 = inlined_call_operand.vmem [shape: s8[8,8,128], index: 6, kind: input, shape index: {}]
  %s7 = inlined_call_operand.vmem [shape: s8[8,8,128], index: 7, kind: input, shape index: {}]
  %s8 = inlined_call_operand.vmem [shape: f32[8,128], index: 8, kind: input, shape index: {}]
  %s9 = inlined_call_operand.vmem [shape: f32[1,3,128], index: 9, kind: output, shape index: {}]
  %s10 = sld [smem:[#allocation0]]
  $region50: #{tpu_custom_call.1} parent=0
    _
  %s12 = ssub.s32 1, %s10
  %s13 = scalar_select 0, %s12, %s10
  // Predicated region
  $region2: #{tpu_custom_call.1} parent=0 // pred_check
    _
  $region3: #{tpu_custom_call.1} parent=0 // pred_check_branch
    %15 = sbr.rel (0) target = $region5
  $region4: #{tpu_custom_call.1} parent=0 // pred_region
    %s16 = sadd.s32 0, 0
    %p17 = scmp.lt.s32.totalorder %s16, 0
    %s18 = scalar_select %p17, %s16, 0
    %s19 = smul.addr %s18, 8
    %s20 = scalar_lea.vmem %s0, %s19
    %s21 = sadd.s32 0, 0
  $region5: #{tpu_custom_call.1} parent=0 // pred_fallthru
    _
  // Predicated region
  $region6: #{tpu_custom_call.1} parent=0 // pred_check
    _
  $region7: #{tpu_custom_call.1} parent=0 // pred_check_branch
    %23 = sbr.rel (0) target = $region9
  $region8: #{tpu_custom_call.1} parent=0 // pred_region
    %s24 = sadd.s32 0, 0
    %p25 = scmp.lt.s32.totalorder %s24, 0
    %s26 = scalar_select %p25, %s24, 0
    %s27 = smul.addr %s26, 8
    %s28 = scalar_lea.vmem %s1, %s27
    %s29 = sadd.s32 0, 0
  $region9: #{tpu_custom_call.1} parent=0 // pred_fallthru
    _
  // Predicated region
  $region10: #{tpu_custom_call.1} parent=0 // pred_check
    _
  $region11: #{tpu_custom_call.1} parent=0 // pred_check_branch
    %31 = sbr.rel (0) target = $region13
  $region12: #{tpu_custom_call.1} parent=0 // pred_region
    %s32 = sadd.s32 0, 0
    %s33 = smul.u32 8, %s32
    %p34 = scmp.lt.s32.totalorder %s33, 7
    %s35 = scalar_select %p34, %s33, 7
    %s36 = smul.addr %s35, 16
    %s37 = smul.addr %s36, 8
    %s38 = scalar_lea.vmem %s2, %s37
    %s39 = sadd.s32 0, 0
    %s40 = smul.u32 8, %s39
  $region13: #{tpu_custom_call.1} parent=0 // pred_fallthru
    _
  // Predicated region
  $region14: #{tpu_custom_call.1} parent=0 // pred_check
    _
  $region15: #{tpu_custom_call.1} parent=0 // pred_check_branch
    %42 = sbr.rel (0) target = $region17
  $region16: #{tpu_custom_call.1} parent=0 // pred_region
    %s43 = sadd.s32 0, 0
    %s44 = smul.u32 8, %s43
    %p45 = scmp.lt.s32.totalorder %s44, 7
    %s46 = scalar_select %p45, %s44, 7
    %s47 = smul.addr %s46, 16
    %s48 = smul.addr %s47, 8
    %s49 = scalar_lea.vmem %s3, %s48
    %s50 = sadd.s32 0, 0
    %s51 = smul.u32 8, %s50
  $region17: #{tpu_custom_call.1} parent=0 // pred_fallthru
    _
  // Predicated region
  $region18: #{tpu_custom_call.1} parent=0 // pred_check
    _
  $region19: #{tpu_custom_call.1} parent=0 // pred_check_branch
    %53 = sbr.rel (0) target = $region21
  $region20: #{tpu_custom_call.1} parent=0 // pred_region
    %s54 = sadd.s32 0, 0
    %p55 = scmp.lt.s32.totalorder %s54, 0
    %s56 = scalar_select %p55, %s54, 0
    %s57 = smul.addr %s56, 8
    %s58 = scalar_lea.vmem %s4, %s57
    %s59 = sadd.s32 0, 0
  $region21: #{tpu_custom_call.1} parent=0 // pred_fallthru
    _
  // Predicated region
  $region22: #{tpu_custom_call.1} parent=0 // pred_check
    _
  $region23: #{tpu_custom_call.1} parent=0 // pred_check_branch
    %61 = sbr.rel (0) target = $region25
  $region24: #{tpu_custom_call.1} parent=0 // pred_region
    %s62 = sadd.s32 0, 0
    %p63 = scmp.lt.s32.totalorder %s62, 0
    %s64 = scalar_select %p63, %s62, 0
    %s65 = smul.addr %s64, 8
    %s66 = scalar_lea.vmem %s5, %s65
    %s67 = sadd.s32 0, 0
  $region25: #{tpu_custom_call.1} parent=0 // pred_fallthru
    _
  // Predicated region
  $region26: #{tpu_custom_call.1} parent=0 // pred_check
    _
  $region27: #{tpu_custom_call.1} parent=0 // pred_check_branch
    %69 = sbr.rel (0) target = $region29
  $region28: #{tpu_custom_call.1} parent=0 // pred_region
    %s70 = sadd.s32 0, 0
    %s71 = smul.u32 8, %s70
    %p72 = scmp.lt.s32.totalorder %s71, 7
    %s73 = scalar_select %p72, %s71, 7
    %s74 = smul.addr %s73, 2
    %s75 = scalar_lea.vmem %s6, %s74
    %s76 = sadd.s32 0, 0
    %s77 = smul.u32 8, %s76
  $region29: #{tpu_custom_call.1} parent=0 // pred_fallthru
    _
  // Predicated region
  $region30: #{tpu_custom_call.1} parent=0 // pred_check
    _
  $region31: #{tpu_custom_call.1} parent=0 // pred_check_branch
    %79 = sbr.rel (0) target = $region33
  $region32: #{tpu_custom_call.1} parent=0 // pred_region
    %s80 = sadd.s32 0, 0
    %s81 = smul.u32 8, %s80
    %p82 = scmp.lt.s32.totalorder %s81, 7
    %s83 = scalar_select %p82, %s81, 7
    %s84 = smul.addr %s83, 2
    %s85 = scalar_lea.vmem %s7, %s84
    %s86 = sadd.s32 0, 0
    %s87 = smul.u32 8, %s86
  $region33: #{tpu_custom_call.1} parent=0 // pred_fallthru
    _
  // Predicated region
  $region34: #{tpu_custom_call.1} parent=0 // pred_check
    _
  $region35: #{tpu_custom_call.1} parent=0 // pred_check_branch
    %89 = sbr.rel (0) target = $region37
  $region36: #{tpu_custom_call.1} parent=0 // pred_region
    %s90 = sadd.s32 0, 0
    %p91 = scmp.lt.s32.totalorder %s90, 0
    %s92 = scalar_select %p91, %s90, 0
    %s93 = smul.addr %s92, 8
    %s94 = scalar_lea.vmem %s8, %s93
    %s95 = sadd.s32 0, 0
  $region37: #{tpu_custom_call.1} parent=0 // pred_fallthru
    _
  %s96 = sadd.s32 0, 0
  %p97 = scmp.lt.s32.totalorder %s96, 0
  %s98 = scalar_select %p97, %s96, 0
  %s99 = smul.addr %s98, 8
  %s100 = scalar_lea.vmem %s0, %s99
  %s101 = sadd.s32 0, 0
  %p102 = scmp.lt.s32.totalorder %s101, 0
  %s103 = scalar_select %p102, %s101, 0
  %s104 = smul.addr %s103, 8
  %s105 = scalar_lea.vmem %s1, %s104
  %s106 = sadd.s32 0, 0
  %s107 = smul.u32 8, %s106
  %p108 = scmp.lt.s32.totalorder %s107, 7
  %s109 = scalar_select %p108, %s107, 7
  %s110 = smul.addr %s109, 16
  %s111 = smul.addr %s110, 8
  %s112 = scalar_lea.vmem %s2, %s111
  %s113 = sadd.s32 0, 0
  %s114 = smul.u32 8, %s113
  %p115 = scmp.lt.s32.totalorder %s114, 7
  %s116 = scalar_select %p115, %s114, 7
  %s117 = smul.addr %s116, 16
  %s118 = smul.addr %s117, 8
  %s119 = scalar_lea.vmem %s3, %s118
  %s120 = sadd.s32 0, 0
  %p121 = scmp.lt.s32.totalorder %s120, 0
  %s122 = scalar_select %p121, %s120, 0
  %s123 = smul.addr %s122, 8
  %s124 = scalar_lea.vmem %s4, %s123
  %s125 = sadd.s32 0, 0
  %p126 = scmp.lt.s32.totalorder %s125, 0
  %s127 = scalar_select %p126, %s125, 0
  %s128 = smul.addr %s127, 8
  %s129 = scalar_lea.vmem %s5, %s128
  %s130 = sadd.s32 0, 0
  %s131 = smul.u32 8, %s130
  %p132 = scmp.lt.s32.totalorder %s131, 7
  %s133 = scalar_select %p132, %s131, 7
  %s134 = smul.addr %s133, 2
  %s135 = scalar_lea.vmem %s6, %s134
  %s136 = sadd.s32 0, 0
  %s137 = smul.u32 8, %s136
  %p138 = scmp.lt.s32.totalorder %s137, 7
  %s139 = scalar_select %p138, %s137, 7
  %s140 = smul.addr %s139, 2
  %s141 = scalar_lea.vmem %s7, %s140
  %s142 = sadd.s32 0, 0
  %p143 = scmp.lt.s32.totalorder %s142, 0
  %s144 = scalar_select %p143, %s142, 0
  %s145 = smul.addr %s144, 8
  %s146 = scalar_lea.vmem %s8, %s145
  %s147 = sadd.s32 0, 0
  %p148 = scmp.lt.s32.totalorder %s147, 0
  %s149 = scalar_select %p148, %s147, 0
  %s150 = smul.addr %s149, 8
  %s151 = scalar_lea.vmem %s0, %s150
  %s152 = sadd.s32 0, 0
  %s153 = sadd.s32 0, 0
  %p154 = scmp.lt.s32.totalorder %s153, 0
  %s155 = scalar_select %p154, %s153, 0
  %s156 = smul.addr %s155, 8
  %s157 = scalar_lea.vmem %s1, %s156
  %s158 = sadd.s32 0, 0
  %s159 = sadd.s32 0, 0
  %s160 = smul.u32 8, %s159
  %p161 = scmp.lt.s32.totalorder %s160, 7
  %s162 = scalar_select %p161, %s160, 7
  %s163 = smul.addr %s162, 16
  %s164 = smul.addr %s163, 8
  %s165 = scalar_lea.vmem %s2, %s164
  %s166 = sadd.s32 0, 0
  %s167 = smul.u32 8, %s166
  %s168 = sadd.s32 0, 0
  %s169 = smul.u32 8, %s168
  %p170 = scmp.lt.s32.totalorder %s169, 7
  %s171 = scalar_select %p170, %s169, 7
  %s172 = smul.addr %s171, 16
  %s173 = smul.addr %s172, 8
  %s174 = scalar_lea.vmem %s3, %s173
  %s175 = sadd.s32 0, 0
  %s176 = smul.u32 8, %s175
  %s177 = sadd.s32 0, 0
  %p178 = scmp.lt.s32.totalorder %s177, 0
  %s179 = scalar_select %p178, %s177, 0
  %s180 = smul.addr %s179, 8
  %s181 = scalar_lea.vmem %s4, %s180
  %s182 = sadd.s32 0, 0
  %s183 = sadd.s32 0, 0
  %p184 = scmp.lt.s32.totalorder %s183, 0
  %s185 = scalar_select %p184, %s183, 0
  %s186 = smul.addr %s185, 8
  %s187 = scalar_lea.vmem %s5, %s186
  %s188 = sadd.s32 0, 0
  %s189 = sadd.s32 0, 0
  %s190 = smul.u32 8, %s189
  %p191 = scmp.lt.s32.totalorder %s190, 7
  %s192 = scalar_select %p191, %s190, 7
  %s193 = smul.addr %s192, 2
  %s194 = scalar_lea.vmem %s6, %s193
  %s195 = sadd.s32 0, 0
  %s196 = smul.u32 8, %s195
  %s197 = sadd.s32 0, 0
  %s198 = smul.u32 8, %s197
  %p199 = scmp.lt.s32.totalorder %s198, 7
  %s200 = scalar_select %p199, %s198, 7
  %s201 = smul.addr %s200, 2
  %s202 = scalar_lea.vmem %s7, %s201
  %s203 = sadd.s32 0, 0
  %s204 = smul.u32 8, %s203
  %s205 = sadd.s32 0, 0
  %p206 = scmp.lt.s32.totalorder %s205, 0
  %s207 = scalar_select %p206, %s205, 0
  %s208 = smul.addr %s207, 8
  %s209 = scalar_lea.vmem %s8, %s208
  %s210 = sadd.s32 0, 0
  %p211 = scmp.eq.s32.totalorder 0, 0
  // Predicated region
  $region38: #{tpu_custom_call.1} parent=0 // pred_check
    %p212 = pneg %p211
  $region39: #{tpu_custom_call.1} parent=0 // pred_check_branch
    %214 = sbr.rel (%p212) target = $region41
  $region40: #{tpu_custom_call.1} parent=0 // pred_region
    %215 = vst [vmem:[%s9] sm:$0x7] 0.0
  $region41: #{tpu_custom_call.1} parent=0 // pred_fallthru
    _
  %v216 = vld [vmem:[%s209] sm:$0xff]
  %v217 = vsub.f32 1.0, %v216
  %v218 = vld [vmem:[%s151] sm:$0xff]
  %v219 = vld [vmem:[%s181] sm:$0xff]
  %vm220 = vcmp.gt.f32.partialorder %v219, 0.5
  %v221 = vsub.f32 1.0, %v218
  %v222 = vsel %vm220, %v218, %v221
  %v223 = vlog2.pop %v222
  %v224 = vmul.f32 %v223, 0.6931472
  %v225 = vmax.f32 %v224, -100.0
  %v226 = vsub.f32 0.0, %v225
  %v227 = vld [vmem:[%s157] sm:$0xff]
  %v228 = vld [vmem:[%s187] sm:$0xff]
  %vm229 = vcmp.gt.f32.partialorder %v228, 0.5
  %v230 = vsub.f32 1.0, %v227
  %v231 = vsel %vm229, %v227, %v230
  %v232 = vlog2.pop %v231
  %v233 = vmul.f32 %v232, 0.6931472
  %v234 = vmax.f32 %v233, -100.0
  %v235 = vsub.f32 0.0, %v234
  %v236 = vadd.f32 %v226, %v235
  %v237 = vmul.f32 %v236, %v217
  %v238 = vrot.slane %v237, 4
  %v239 = vadd.f32 %v237, %v238
  %v240 = vrot.slane %v239, 2
  %v241 = vadd.f32 %v239, %v240
  %v242 = vrot.slane %v241, 1
  %v243 = vadd.f32 %v241, %v242
  %v244 = vrot.slane %v217, 4
  %v245 = vadd.f32 %v217, %v244
  %v246 = vrot.slane %v245, 2
  %v247 = vadd.f32 %v245, %v246
  %v248 = vrot.slane %v247, 1
  %v249 = vadd.f32 %v247, %v248
  %v250 = vld [vmem:[%s165] sm:$0xff]
  %v251 = vld [vmem:[%s165 + $0x8] sm:$0xff]
  %v252 = vld [vmem:[%s165 + $0x10] sm:$0xff]
  %v253 = vld [vmem:[%s165 + $0x18] sm:$0xff]
  %v254 = vld [vmem:[%s165 + $0x20] sm:$0xff]
  %v255 = vld [vmem:[%s165 + $0x28] sm:$0xff]
  %v256 = vld [vmem:[%s165 + $0x30] sm:$0xff]
  %v257 = vld [vmem:[%s165 + $0x38] sm:$0xff]
  %v258 = vld [vmem:[%s165 + $0x40] sm:$0xff]
  %v259 = vld [vmem:[%s165 + $0x48] sm:$0xff]
  %v260 = vld [vmem:[%s165 + $0x50] sm:$0xff]
  %v261 = vld [vmem:[%s165 + $0x58] sm:$0xff]
  %v262 = vld [vmem:[%s165 + $0x60] sm:$0xff]
  %v263 = vld [vmem:[%s165 + $0x68] sm:$0xff]
  %v264 = vld [vmem:[%s165 + $0x70] sm:$0xff]
  %v265 = vld [vmem:[%s165 + $0x78] sm:$0xff]
  %266 = vxpose.xlu0.b32.start [1/16] %v250, 128
  %267 = vxpose.xlu0.b32.cont [2/16] %v251, 128
  %268 = vxpose.xlu0.b32.cont [3/16] %v252, 128
  %269 = vxpose.xlu0.b32.cont [4/16] %v253, 128
  %270 = vxpose.xlu0.b32.cont [5/16] %v254, 128
  %271 = vxpose.xlu0.b32.cont [6/16] %v255, 128
  %272 = vxpose.xlu0.b32.cont [7/16] %v256, 128
  %273 = vxpose.xlu0.b32.cont [8/16] %v257, 128
  %274 = vxpose.xlu0.b32.cont [9/16] %v258, 128
  %275 = vxpose.xlu0.b32.cont [10/16] %v259, 128
  %276 = vxpose.xlu0.b32.cont [11/16] %v260, 128
  %277 = vxpose.xlu0.b32.cont [12/16] %v261, 128
  %278 = vxpose.xlu0.b32.cont [13/16] %v262, 128
  %279 = vxpose.xlu0.b32.cont [14/16] %v263, 128
  %280 = vxpose.xlu0.b32.cont [15/16] %v264, 128
  %281 = vxpose.xlu0.b32.end [16/16] %v265, 128
  %v282 = vpop.trf.xlu0
  %v283 = vpop.trf.xlu0
  %v284 = vpop.trf.xlu0
  %v285 = vpop.trf.xlu0
  %v286 = vpop.trf.xlu0
  %v287 = vpop.trf.xlu0
  %v288 = vpop.trf.xlu0
  %v289 = vpop.trf.xlu0
  %v290 = vpop.trf.xlu0
  %v291 = vpop.trf.xlu0
  %v292 = vpop.trf.xlu0
  %v293 = vpop.trf.xlu0
  %v294 = vpop.trf.xlu0
  %v295 = vpop.trf.xlu0
  %v296 = vpop.trf.xlu0
  %v297 = vpop.trf.xlu0
  %v298 = vld [vmem:[%s174] sm:$0xff]
  %v299 = vld [vmem:[%s174 + $0x8] sm:$0xff]
  %v300 = vld [vmem:[%s174 + $0x10] sm:$0xff]
  %v301 = vld [vmem:[%s174 + $0x18] sm:$0xff]
  %v302 = vld [vmem:[%s174 + $0x20] sm:$0xff]
  %v303 = vld [vmem:[%s174 + $0x28] sm:$0xff]
  %v304 = vld [vmem:[%s174 + $0x30] sm:$0xff]
  %v305 = vld [vmem:[%s174 + $0x38] sm:$0xff]
  %v306 = vld [vmem:[%s174 + $0x40] sm:$0xff]
  %v307 = vld [vmem:[%s174 + $0x48] sm:$0xff]
  %v308 = vld [vmem:[%s174 + $0x50] sm:$0xff]
  %v309 = vld [vmem:[%s174 + $0x58] sm:$0xff]
  %v310 = vld [vmem:[%s174 + $0x60] sm:$0xff]
  %v311 = vld [vmem:[%s174 + $0x68] sm:$0xff]
  %v312 = vld [vmem:[%s174 + $0x70] sm:$0xff]
  %v313 = vld [vmem:[%s174 + $0x78] sm:$0xff]
  %314 = vxpose.xlu0.b32.start [1/16] %v298, 128
  %315 = vxpose.xlu0.b32.cont [2/16] %v299, 128
  %316 = vxpose.xlu0.b32.cont [3/16] %v300, 128
  %317 = vxpose.xlu0.b32.cont [4/16] %v301, 128
  %318 = vxpose.xlu0.b32.cont [5/16] %v302, 128
  %319 = vxpose.xlu0.b32.cont [6/16] %v303, 128
  %320 = vxpose.xlu0.b32.cont [7/16] %v304, 128
  %321 = vxpose.xlu0.b32.cont [8/16] %v305, 128
  %322 = vxpose.xlu0.b32.cont [9/16] %v306, 128
  %323 = vxpose.xlu0.b32.cont [10/16] %v307, 128
  %324 = vxpose.xlu0.b32.cont [11/16] %v308, 128
  %325 = vxpose.xlu0.b32.cont [12/16] %v309, 128
  %326 = vxpose.xlu0.b32.cont [13/16] %v310, 128
  %327 = vxpose.xlu0.b32.cont [14/16] %v311, 128
  %328 = vxpose.xlu0.b32.cont [15/16] %v312, 128
  %329 = vxpose.xlu0.b32.end [16/16] %v313, 128
  %v330 = vpop.trf.xlu0
  %v331 = vpop.trf.xlu0
  %v332 = vpop.trf.xlu0
  %v333 = vpop.trf.xlu0
  %v334 = vpop.trf.xlu0
  %v335 = vpop.trf.xlu0
  %v336 = vpop.trf.xlu0
  %v337 = vpop.trf.xlu0
  %v338 = vpop.trf.xlu0
  %v339 = vpop.trf.xlu0
  %v340 = vpop.trf.xlu0
  %v341 = vpop.trf.xlu0
  %v342 = vpop.trf.xlu0
  %v343 = vpop.trf.xlu0
  %v344 = vpop.trf.xlu0
  %v345 = vpop.trf.xlu0
  %v346 = vld [vmem:[%s194] sm:$0x3]
  %v347 = vunpack.c.0.s8 %v346
  %v348 = vcvt.s32.f32 %v347
  %vm349 = vcmp.gt.f32.partialorder %v348, 0.5
  %v350 = vsub.f32 1.0, %v282
  %v351 = vsel %vm349, %v282, %v350
  %v352 = vlog2.pop %v351
  %v353 = vmul.f32 %v352, 0.6931472
  %v354 = vmax.f32 %v353, -100.0
  %v355 = vsub.f32 0.0, %v354
  %v356 = vld [vmem:[%s202] sm:$0x3]
  %v357 = vunpack.c.0.s8 %v356
  %v358 = vcvt.s32.f32 %v357
  %vm359 = vcmp.gt.f32.partialorder %v358, 0.5
  %v360 = vsub.f32 1.0, %v330
  %v361 = vsel %vm359, %v330, %v360
  %v362 = vlog2.pop %v361
  %v363 = vmul.f32 %v362, 0.6931472
  %v364 = vmax.f32 %v363, -100.0
  %v365 = vsub.f32 0.0, %v364
  %v366 = vadd.f32 %v355, %v365
  %v367 = vrot.slane %v366, 4
  %v368 = vadd.f32 %v366, %v367
  %v369 = vrot.slane %v368, 2
  %v370 = vadd.f32 %v368, %v369
  %v371 = vrot.slane %v370, 1
  %v372 = vadd.f32 %v370, %v371
  %v373 = vmul.f32 %v372, %v217
  %v374 = vadd.f32 %v373, 0.0
  %s375 = scalar_lea.vmem %s165, 128
  %v376 = vld [vmem:[%s375] sm:$0xff]
  %v377 = vld [vmem:[%s375 + $0x8] sm:$0xff]
  %v378 = vld [vmem:[%s375 + $0x10] sm:$0xff]
  %v379 = vld [vmem:[%s375 + $0x18] sm:$0xff]
  %v380 = vld [vmem:[%s375 + $0x20] sm:$0xff]
  %v381 = vld [vmem:[%s375 + $0x28] sm:$0xff]
  %v382 = vld [vmem:[%s375 + $0x30] sm:$0xff]
  %v383 = vld [vmem:[%s375 + $0x38] sm:$0xff]
  %v384 = vld [vmem:[%s375 + $0x40] sm:$0xff]
  %v385 = vld [vmem:[%s375 + $0x48] sm:$0xff]
  %v386 = vld [vmem:[%s375 + $0x50] sm:$0xff]
  %v387 = vld [vmem:[%s375 + $0x58] sm:$0xff]
  %v388 = vld [vmem:[%s375 + $0x60] sm:$0xff]
  %v389 = vld [vmem:[%s375 + $0x68] sm:$0xff]
  %v390 = vld [vmem:[%s375 + $0x70] sm:$0xff]
  %v391 = vld [vmem:[%s375 + $0x78] sm:$0xff]
  %392 = vxpose.xlu0.b32.start [1/16] %v376, 128
  %393 = vxpose.xlu0.b32.cont [2/16] %v377, 128
  %394 = vxpose.xlu0.b32.cont [3/16] %v378, 128
  %395 = vxpose.xlu0.b32.cont [4/16] %v379, 128
  %396 = vxpose.xlu0.b32.cont [5/16] %v380, 128
  %397 = vxpose.xlu0.b32.cont [6/16] %v381, 128
  %398 = vxpose.xlu0.b32.cont [7/16] %v382, 128
  %399 = vxpose.xlu0.b32.cont [8/16] %v383, 128
  %400 = vxpose.xlu0.b32.cont [9/16] %v384, 128
  %401 = vxpose.xlu0.b32.cont [10/16] %v385, 128
  %402 = vxpose.xlu0.b32.cont [11/16] %v386, 128
  %403 = vxpose.xlu0.b32.cont [12/16] %v387, 128
  %404 = vxpose.xlu0.b32.cont [13/16] %v388, 128
  %405 = vxpose.xlu0.b32.cont [14/16] %v389, 128
  %406 = vxpose.xlu0.b32.cont [15/16] %v390, 128
  %407 = vxpose.xlu0.b32.end [16/16] %v391, 128
  %v408 = vpop.trf.xlu0
  %v409 = vpop.trf.xlu0
  %v410 = vpop.trf.xlu0
  %v411 = vpop.trf.xlu0
  %v412 = vpop.trf.xlu0
  %v413 = vpop.trf.xlu0
  %v414 = vpop.trf.xlu0
  %v415 = vpop.trf.xlu0
  %v416 = vpop.trf.xlu0
  %v417 = vpop.trf.xlu0
  %v418 = vpop.trf.xlu0
  %v419 = vpop.trf.xlu0
  %v420 = vpop.trf.xlu0
  %v421 = vpop.trf.xlu0
  %v422 = vpop.trf.xlu0
  %v423 = vpop.trf.xlu0
  %s424 = scalar_lea.vmem %s174, 128
  %v425 = vld [vmem:[%s424] sm:$0xff]
  %v426 = vld [vmem:[%s424 + $0x8] sm:$0xff]
  %v427 = vld [vmem:[%s424 + $0x10] sm:$0xff]
  %v428 = vld [vmem:[%s424 + $0x18] sm:$0xff]
  %v429 = vld [vmem:[%s424 + $0x20] sm:$0xff]
  %v430 = vld [vmem:[%s424 + $0x28] sm:$0xff]
  %v431 = vld [vmem:[%s424 + $0x30] sm:$0xff]
  %v432 = vld [vmem:[%s424 + $0x38] sm:$0xff]
  %v433 = vld [vmem:[%s424 + $0x40] sm:$0xff]
  %v434 = vld [vmem:[%s424 + $0x48] sm:$0xff]
  %v435 = vld [vmem:[%s424 + $0x50] sm:$0xff]
  %v436 = vld [vmem:[%s424 + $0x58] sm:$0xff]
  %v437 = vld [vmem:[%s424 + $0x60] sm:$0xff]
  %v438 = vld [vmem:[%s424 + $0x68] sm:$0xff]
  %v439 = vld [vmem:[%s424 + $0x70] sm:$0xff]
  %v440 = vld [vmem:[%s424 + $0x78] sm:$0xff]
  %441 = vxpose.xlu0.b32.start [1/16] %v425, 128
  %442 = vxpose.xlu0.b32.cont [2/16] %v426, 128
  %443 = vxpose.xlu0.b32.cont [3/16] %v427, 128
  %444 = vxpose.xlu0.b32.cont [4/16] %v428, 128
  %445 = vxpose.xlu0.b32.cont [5/16] %v429, 128
  %446 = vxpose.xlu0.b32.cont [6/16] %v430, 128
  %447 = vxpose.xlu0.b32.cont [7/16] %v431, 128
  %448 = vxpose.xlu0.b32.cont [8/16] %v432, 128
  %449 = vxpose.xlu0.b32.cont [9/16] %v433, 128
  %450 = vxpose.xlu0.b32.cont [10/16] %v434, 128
  %451 = vxpose.xlu0.b32.cont [11/16] %v435, 128
  %452 = vxpose.xlu0.b32.cont [12/16] %v436, 128
  %453 = vxpose.xlu0.b32.cont [13/16] %v437, 128
  %454 = vxpose.xlu0.b32.cont [14/16] %v438, 128
  %455 = vxpose.xlu0.b32.cont [15/16] %v439, 128
  %456 = vxpose.xlu0.b32.end [16/16] %v440, 128
  %v457 = vpop.trf.xlu0
  %v458 = vpop.trf.xlu0
  %v459 = vpop.trf.xlu0
  %v460 = vpop.trf.xlu0
  %v461 = vpop.trf.xlu0
  %v462 = vpop.trf.xlu0
  %v463 = vpop.trf.xlu0
  %v464 = vpop.trf.xlu0
  %v465 = vpop.trf.xlu0
  %v466 = vpop.trf.xlu0
  %v467 = vpop.trf.xlu0
  %v468 = vpop.trf.xlu0
  %v469 = vpop.trf.xlu0
  %v470 = vpop.trf.xlu0
  %v471 = vpop.trf.xlu0
  %v472 = vpop.trf.xlu0
  %s473 = scalar_lea.vmem %s194, 2
  %v474 = vld [vmem:[%s473] sm:$0x3]
  %v475 = vunpack.c.0.s8 %v474
  %v476 = vcvt.s32.f32 %v475
  %vm477 = vcmp.gt.f32.partialorder %v476, 0.5
  %v478 = vsub.f32 1.0, %v408
  %v479 = vsel %vm477, %v408, %v478
  %v480 = vlog2.pop %v479
  %v481 = vmul.f32 %v480, 0.6931472
  %v482 = vmax.f32 %v481, -100.0
  %v483 = vsub.f32 0.0, %v482
  %s484 = scalar_lea.vmem %s202, 2
  %v485 = vld [vmem:[%s484] sm:$0x3]
  %v486 = vunpack.c.0.s8 %v485
  %v487 = vcvt.s32.f32 %v486
  %vm488 = vcmp.gt.f32.partialorder %v487, 0.5
  %v489 = vsub.f32 1.0, %v457
  %v490 = vsel %vm488, %v457, %v489
  %v491 = vlog2.pop %v490
  %v492 = vmul.f32 %v491, 0.6931472
  %v493 = vmax.f32 %v492, -100.0
  %v494 = vsub.f32 0.0, %v493
  %v495 = vadd.f32 %v483, %v494
  %v496 = vrot.slane %v495, 4
  %v497 = vadd.f32 %v495, %v496
  %v498 = vrot.slane %v497, 2
  %v499 = vadd.f32 %v497, %v498
  %v500 = vrot.slane %v499, 1
  %v501 = vadd.f32 %v499, %v500
  %v502 = vmul.f32 %v501, %v217
  %v504 = vrot.slane %v502, 1
  %v506 = vadd.f32 %v374, %v504
  %s507 = scalar_lea.vmem %s165, 256
  %v508 = vld [vmem:[%s507] sm:$0xff]
  %v509 = vld [vmem:[%s507 + $0x8] sm:$0xff]
  %v510 = vld [vmem:[%s507 + $0x10] sm:$0xff]
  %v511 = vld [vmem:[%s507 + $0x18] sm:$0xff]
  %v512 = vld [vmem:[%s507 + $0x20] sm:$0xff]
  %v513 = vld [vmem:[%s507 + $0x28] sm:$0xff]
  %v514 = vld [vmem:[%s507 + $0x30] sm:$0xff]
  %v515 = vld [vmem:[%s507 + $0x38] sm:$0xff]
  %v516 = vld [vmem:[%s507 + $0x40] sm:$0xff]
  %v517 = vld [vmem:[%s507 + $0x48] sm:$0xff]
  %v518 = vld [vmem:[%s507 + $0x50] sm:$0xff]
  %v519 = vld [vmem:[%s507 + $0x58] sm:$0xff]
  %v520 = vld [vmem:[%s507 + $0x60] sm:$0xff]
  %v521 = vld [vmem:[%s507 + $0x68] sm:$0xff]
  %v522 = vld [vmem:[%s507 + $0x70] sm:$0xff]
  %v523 = vld [vmem:[%s507 + $0x78] sm:$0xff]
  %524 = vxpose.xlu0.b32.start [1/16] %v508, 128
  %525 = vxpose.xlu0.b32.cont [2/16] %v509, 128
  %526 = vxpose.xlu0.b32.cont [3/16] %v510, 128
  %527 = vxpose.xlu0.b32.cont [4/16] %v511, 128
  %528 = vxpose.xlu0.b32.cont [5/16] %v512, 128
  %529 = vxpose.xlu0.b32.cont [6/16] %v513, 128
  %530 = vxpose.xlu0.b32.cont [7/16] %v514, 128
  %531 = vxpose.xlu0.b32.cont [8/16] %v515, 128
  %532 = vxpose.xlu0.b32.cont [9/16] %v516, 128
  %533 = vxpose.xlu0.b32.cont [10/16] %v517, 128
  %534 = vxpose.xlu0.b32.cont [11/16] %v518, 128
  %535 = vxpose.xlu0.b32.cont [12/16] %v519, 128
  %536 = vxpose.xlu0.b32.cont [13/16] %v520, 128
  %537 = vxpose.xlu0.b32.cont [14/16] %v521, 128
  %538 = vxpose.xlu0.b32.cont [15/16] %v522, 128
  %539 = vxpose.xlu0.b32.end [16/16] %v523, 128
  %v540 = vpop.trf.xlu0
  %v541 = vpop.trf.xlu0
  %v542 = vpop.trf.xlu0
  %v543 = vpop.trf.xlu0
  %v544 = vpop.trf.xlu0
  %v545 = vpop.trf.xlu0
  %v546 = vpop.trf.xlu0
  %v547 = vpop.trf.xlu0
  %v548 = vpop.trf.xlu0
  %v549 = vpop.trf.xlu0
  %v550 = vpop.trf.xlu0
  %v551 = vpop.trf.xlu0
  %v552 = vpop.trf.xlu0
  %v553 = vpop.trf.xlu0
  %v554 = vpop.trf.xlu0
  %v555 = vpop.trf.xlu0
  %s556 = scalar_lea.vmem %s174, 256
  %v557 = vld [vmem:[%s556] sm:$0xff]
  %v558 = vld [vmem:[%s556 + $0x8] sm:$0xff]
  %v559 = vld [vmem:[%s556 + $0x10] sm:$0xff]
  %v560 = vld [vmem:[%s556 + $0x18] sm:$0xff]
  %v561 = vld [vmem:[%s556 + $0x20] sm:$0xff]
  %v562 = vld [vmem:[%s556 + $0x28] sm:$0xff]
  %v563 = vld [vmem:[%s556 + $0x30] sm:$0xff]
  %v564 = vld [vmem:[%s556 + $0x38] sm:$0xff]
  %v565 = vld [vmem:[%s556 + $0x40] sm:$0xff]
  %v566 = vld [vmem:[%s556 + $0x48] sm:$0xff]
  %v567 = vld [vmem:[%s556 + $0x50] sm:$0xff]
  %v568 = vld [vmem:[%s556 + $0x58] sm:$0xff]
  %v569 = vld [vmem:[%s556 + $0x60] sm:$0xff]
  %v570 = vld [vmem:[%s556 + $0x68] sm:$0xff]
  %v571 = vld [vmem:[%s556 + $0x70] sm:$0xff]
  %v572 = vld [vmem:[%s556 + $0x78] sm:$0xff]
  %573 = vxpose.xlu0.b32.start [1/16] %v557, 128
  %574 = vxpose.xlu0.b32.cont [2/16] %v558, 128
  %575 = vxpose.xlu0.b32.cont [3/16] %v559, 128
  %576 = vxpose.xlu0.b32.cont [4/16] %v560, 128
  %577 = vxpose.xlu0.b32.cont [5/16] %v561, 128
  %578 = vxpose.xlu0.b32.cont [6/16] %v562, 128
  %579 = vxpose.xlu0.b32.cont [7/16] %v563, 128
  %580 = vxpose.xlu0.b32.cont [8/16] %v564, 128
  %581 = vxpose.xlu0.b32.cont [9/16] %v565, 128
  %582 = vxpose.xlu0.b32.cont [10/16] %v566, 128
  %583 = vxpose.xlu0.b32.cont [11/16] %v567, 128
  %584 = vxpose.xlu0.b32.cont [12/16] %v568, 128
  %585 = vxpose.xlu0.b32.cont [13/16] %v569, 128
  %586 = vxpose.xlu0.b32.cont [14/16] %v570, 128
  %587 = vxpose.xlu0.b32.cont [15/16] %v571, 128
  %588 = vxpose.xlu0.b32.end [16/16] %v572, 128
  %v589 = vpop.trf.xlu0
  %v590 = vpop.trf.xlu0
  %v591 = vpop.trf.xlu0
  %v592 = vpop.trf.xlu0
  %v593 = vpop.trf.xlu0
  %v594 = vpop.trf.xlu0
  %v595 = vpop.trf.xlu0
  %v596 = vpop.trf.xlu0
  %v597 = vpop.trf.xlu0
  %v598 = vpop.trf.xlu0
  %v599 = vpop.trf.xlu0
  %v600 = vpop.trf.xlu0
  %v601 = vpop.trf.xlu0
  %v602 = vpop.trf.xlu0
  %v603 = vpop.trf.xlu0
  %v604 = vpop.trf.xlu0
  %s605 = scalar_lea.vmem %s194, 4
  %v606 = vld [vmem:[%s605] sm:$0x3]
  %v607 = vunpack.c.0.s8 %v606
  %v608 = vcvt.s32.f32 %v607
  %vm609 = vcmp.gt.f32.partialorder %v608, 0.5
  %v610 = vsub.f32 1.0, %v540
  %v611 = vsel %vm609, %v540, %v610
  %v612 = vlog2.pop %v611
  %v613 = vmul.f32 %v612, 0.6931472
  %v614 = vmax.f32 %v613, -100.0
  %v615 = vsub.f32 0.0, %v614
  %s616 = scalar_lea.vmem %s202, 4
  %v617 = vld [vmem:[%s616] sm:$0x3]
  %v618 = vunpack.c.0.s8 %v617
  %v619 = vcvt.s32.f32 %v618
  %vm620 = vcmp.gt.f32.partialorder %v619, 0.5
  %v621 = vsub.f32 1.0, %v589
  %v622 = vsel %vm620, %v589, %v621
  %v623 = vlog2.pop %v622
  %v624 = vmul.f32 %v623, 0.6931472
  %v625 = vmax.f32 %v624, -100.0
  %v626 = vsub.f32 0.0, %v625
  %v627 = vadd.f32 %v615, %v626
  %v628 = vrot.slane %v627, 4
  %v629 = vadd.f32 %v627, %v628
  %v630 = vrot.slane %v629, 2
  %v631 = vadd.f32 %v629, %v630
  %v632 = vrot.slane %v631, 1
  %v633 = vadd.f32 %v631, %v632
  %v634 = vmul.f32 %v633, %v217
  %v636 = vrot.slane %v634, 2
  %v638 = vadd.f32 %v506, %v636
  %s639 = scalar_lea.vmem %s165, 384
  %v640 = vld [vmem:[%s639] sm:$0xff]
  %v641 = vld [vmem:[%s639 + $0x8] sm:$0xff]
  %v642 = vld [vmem:[%s639 + $0x10] sm:$0xff]
  %v643 = vld [vmem:[%s639 + $0x18] sm:$0xff]
  %v644 = vld [vmem:[%s639 + $0x20] sm:$0xff]
  %v645 = vld [vmem:[%s639 + $0x28] sm:$0xff]
  %v646 = vld [vmem:[%s639 + $0x30] sm:$0xff]
  %v647 = vld [vmem:[%s639 + $0x38] sm:$0xff]
  %v648 = vld [vmem:[%s639 + $0x40] sm:$0xff]
  %v649 = vld [vmem:[%s639 + $0x48] sm:$0xff]
  %v650 = vld [vmem:[%s639 + $0x50] sm:$0xff]
  %v651 = vld [vmem:[%s639 + $0x58] sm:$0xff]
  %v652 = vld [vmem:[%s639 + $0x60] sm:$0xff]
  %v653 = vld [vmem:[%s639 + $0x68] sm:$0xff]
  %v654 = vld [vmem:[%s639 + $0x70] sm:$0xff]
  %v655 = vld [vmem:[%s639 + $0x78] sm:$0xff]
  %656 = vxpose.xlu0.b32.start [1/16] %v640, 128
  %657 = vxpose.xlu0.b32.cont [2/16] %v641, 128
  %658 = vxpose.xlu0.b32.cont [3/16] %v642, 128
  %659 = vxpose.xlu0.b32.cont [4/16] %v643, 128
  %660 = vxpose.xlu0.b32.cont [5/16] %v644, 128
  %661 = vxpose.xlu0.b32.cont [6/16] %v645, 128
  %662 = vxpose.xlu0.b32.cont [7/16] %v646, 128
  %663 = vxpose.xlu0.b32.cont [8/16] %v647, 128
  %664 = vxpose.xlu0.b32.cont [9/16] %v648, 128
  %665 = vxpose.xlu0.b32.cont [10/16] %v649, 128
  %666 = vxpose.xlu0.b32.cont [11/16] %v650, 128
  %667 = vxpose.xlu0.b32.cont [12/16] %v651, 128
  %668 = vxpose.xlu0.b32.cont [13/16] %v652, 128
  %669 = vxpose.xlu0.b32.cont [14/16] %v653, 128
  %670 = vxpose.xlu0.b32.cont [15/16] %v654, 128
  %671 = vxpose.xlu0.b32.end [16/16] %v655, 128
  %v672 = vpop.trf.xlu0
  %v673 = vpop.trf.xlu0
  %v674 = vpop.trf.xlu0
  %v675 = vpop.trf.xlu0
  %v676 = vpop.trf.xlu0
  %v677 = vpop.trf.xlu0
  %v678 = vpop.trf.xlu0
  %v679 = vpop.trf.xlu0
  %v680 = vpop.trf.xlu0
  %v681 = vpop.trf.xlu0
  %v682 = vpop.trf.xlu0
  %v683 = vpop.trf.xlu0
  %v684 = vpop.trf.xlu0
  %v685 = vpop.trf.xlu0
  %v686 = vpop.trf.xlu0
  %v687 = vpop.trf.xlu0
  %s688 = scalar_lea.vmem %s174, 384
  %v689 = vld [vmem:[%s688] sm:$0xff]
  %v690 = vld [vmem:[%s688 + $0x8] sm:$0xff]
  %v691 = vld [vmem:[%s688 + $0x10] sm:$0xff]
  %v692 = vld [vmem:[%s688 + $0x18] sm:$0xff]
  %v693 = vld [vmem:[%s688 + $0x20] sm:$0xff]
  %v694 = vld [vmem:[%s688 + $0x28] sm:$0xff]
  %v695 = vld [vmem:[%s688 + $0x30] sm:$0xff]
  %v696 = vld [vmem:[%s688 + $0x38] sm:$0xff]
  %v697 = vld [vmem:[%s688 + $0x40] sm:$0xff]
  %v698 = vld [vmem:[%s688 + $0x48] sm:$0xff]
  %v699 = vld [vmem:[%s688 + $0x50] sm:$0xff]
  %v700 = vld [vmem:[%s688 + $0x58] sm:$0xff]
  %v701 = vld [vmem:[%s688 + $0x60] sm:$0xff]
  %v702 = vld [vmem:[%s688 + $0x68] sm:$0xff]
  %v703 = vld [vmem:[%s688 + $0x70] sm:$0xff]
  %v704 = vld [vmem:[%s688 + $0x78] sm:$0xff]
  %705 = vxpose.xlu0.b32.start [1/16] %v689, 128
  %706 = vxpose.xlu0.b32.cont [2/16] %v690, 128
  %707 = vxpose.xlu0.b32.cont [3/16] %v691, 128
  %708 = vxpose.xlu0.b32.cont [4/16] %v692, 128
  %709 = vxpose.xlu0.b32.cont [5/16] %v693, 128
  %710 = vxpose.xlu0.b32.cont [6/16] %v694, 128
  %711 = vxpose.xlu0.b32.cont [7/16] %v695, 128
  %712 = vxpose.xlu0.b32.cont [8/16] %v696, 128
  %713 = vxpose.xlu0.b32.cont [9/16] %v697, 128
  %714 = vxpose.xlu0.b32.cont [10/16] %v698, 128
  %715 = vxpose.xlu0.b32.cont [11/16] %v699, 128
  %716 = vxpose.xlu0.b32.cont [12/16] %v700, 128
  %717 = vxpose.xlu0.b32.cont [13/16] %v701, 128
  %718 = vxpose.xlu0.b32.cont [14/16] %v702, 128
  %719 = vxpose.xlu0.b32.cont [15/16] %v703, 128
  %720 = vxpose.xlu0.b32.end [16/16] %v704, 128
  %v721 = vpop.trf.xlu0
  %v722 = vpop.trf.xlu0
  %v723 = vpop.trf.xlu0
  %v724 = vpop.trf.xlu0
  %v725 = vpop.trf.xlu0
  %v726 = vpop.trf.xlu0
  %v727 = vpop.trf.xlu0
  %v728 = vpop.trf.xlu0
  %v729 = vpop.trf.xlu0
  %v730 = vpop.trf.xlu0
  %v731 = vpop.trf.xlu0
  %v732 = vpop.trf.xlu0
  %v733 = vpop.trf.xlu0
  %v734 = vpop.trf.xlu0
  %v735 = vpop.trf.xlu0
  %v736 = vpop.trf.xlu0
  %s737 = scalar_lea.vmem %s194, 6
  %v738 = vld [vmem:[%s737] sm:$0x3]
  %v739 = vunpack.c.0.s8 %v738
  %v740 = vcvt.s32.f32 %v739
  %vm741 = vcmp.gt.f32.partialorder %v740, 0.5
  %v742 = vsub.f32 1.0, %v672
  %v743 = vsel %vm741, %v672, %v742
  %v744 = vlog2.pop %v743
  %v745 = vmul.f32 %v744, 0.6931472
  %v746 = vmax.f32 %v745, -100.0
  %v747 = vsub.f32 0.0, %v746
  %s748 = scalar_lea.vmem %s202, 6
  %v749 = vld [vmem:[%s748] sm:$0x3]
  %v750 = vunpack.c.0.s8 %v749
  %v751 = vcvt.s32.f32 %v750
  %vm752 = vcmp.gt.f32.partialorder %v751, 0.5
  %v753 = vsub.f32 1.0, %v721
  %v754 = vsel %vm752, %v721, %v753
  %v755 = vlog2.pop %v754
  %v756 = vmul.f32 %v755, 0.6931472
  %v757 = vmax.f32 %v756, -100.0
  %v758 = vsub.f32 0.0, %v757
  %v759 = vadd.f32 %v747, %v758
  %v760 = vrot.slane %v759, 4
  %v761 = vadd.f32 %v759, %v760
  %v762 = vrot.slane %v761, 2
  %v763 = vadd.f32 %v761, %v762
  %v764 = vrot.slane %v763, 1
  %v765 = vadd.f32 %v763, %v764
  %v766 = vmul.f32 %v765, %v217
  %v768 = vrot.slane %v766, 3
  %v770 = vadd.f32 %v638, %v768
  %s771 = scalar_lea.vmem %s165, 512
  %v772 = vld [vmem:[%s771] sm:$0xff]
  %v773 = vld [vmem:[%s771 + $0x8] sm:$0xff]
  %v774 = vld [vmem:[%s771 + $0x10] sm:$0xff]
  %v775 = vld [vmem:[%s771 + $0x18] sm:$0xff]
  %v776 = vld [vmem:[%s771 + $0x20] sm:$0xff]
  %v777 = vld [vmem:[%s771 + $0x28] sm:$0xff]
  %v778 = vld [vmem:[%s771 + $0x30] sm:$0xff]
  %v779 = vld [vmem:[%s771 + $0x38] sm:$0xff]
  %v780 = vld [vmem:[%s771 + $0x40] sm:$0xff]
  %v781 = vld [vmem:[%s771 + $0x48] sm:$0xff]
  %v782 = vld [vmem:[%s771 + $0x50] sm:$0xff]
  %v783 = vld [vmem:[%s771 + $0x58] sm:$0xff]
  %v784 = vld [vmem:[%s771 + $0x60] sm:$0xff]
  %v785 = vld [vmem:[%s771 + $0x68] sm:$0xff]
  %v786 = vld [vmem:[%s771 + $0x70] sm:$0xff]
  %v787 = vld [vmem:[%s771 + $0x78] sm:$0xff]
  %788 = vxpose.xlu0.b32.start [1/16] %v772, 128
  %789 = vxpose.xlu0.b32.cont [2/16] %v773, 128
  %790 = vxpose.xlu0.b32.cont [3/16] %v774, 128
  %791 = vxpose.xlu0.b32.cont [4/16] %v775, 128
  %792 = vxpose.xlu0.b32.cont [5/16] %v776, 128
  %793 = vxpose.xlu0.b32.cont [6/16] %v777, 128
  %794 = vxpose.xlu0.b32.cont [7/16] %v778, 128
  %795 = vxpose.xlu0.b32.cont [8/16] %v779, 128
  %796 = vxpose.xlu0.b32.cont [9/16] %v780, 128
  %797 = vxpose.xlu0.b32.cont [10/16] %v781, 128
  %798 = vxpose.xlu0.b32.cont [11/16] %v782, 128
  %799 = vxpose.xlu0.b32.cont [12/16] %v783, 128
  %800 = vxpose.xlu0.b32.cont [13/16] %v784, 128
  %801 = vxpose.xlu0.b32.cont [14/16] %v785, 128
  %802 = vxpose.xlu0.b32.cont [15/16] %v786, 128
  %803 = vxpose.xlu0.b32.end [16/16] %v787, 128
  %v804 = vpop.trf.xlu0
  %v805 = vpop.trf.xlu0
  %v806 = vpop.trf.xlu0
  %v807 = vpop.trf.xlu0
  %v808 = vpop.trf.xlu0
  %v809 = vpop.trf.xlu0
  %v810 = vpop.trf.xlu0
  %v811 = vpop.trf.xlu0
  %v812 = vpop.trf.xlu0
  %v813 = vpop.trf.xlu0
  %v814 = vpop.trf.xlu0
  %v815 = vpop.trf.xlu0
  %v816 = vpop.trf.xlu0
  %v817 = vpop.trf.xlu0
  %v818 = vpop.trf.xlu0
  %v819 = vpop.trf.xlu0
  %s820 = scalar_lea.vmem %s174, 512
  %v821 = vld [vmem:[%s820] sm:$0xff]
  %v822 = vld [vmem:[%s820 + $0x8] sm:$0xff]
  %v823 = vld [vmem:[%s820 + $0x10] sm:$0xff]
  %v824 = vld [vmem:[%s820 + $0x18] sm:$0xff]
  %v825 = vld [vmem:[%s820 + $0x20] sm:$0xff]
  %v826 = vld [vmem:[%s820 + $0x28] sm:$0xff]
  %v827 = vld [vmem:[%s820 + $0x30] sm:$0xff]
  %v828 = vld [vmem:[%s820 + $0x38] sm:$0xff]
  %v829 = vld [vmem:[%s820 + $0x40] sm:$0xff]
  %v830 = vld [vmem:[%s820 + $0x48] sm:$0xff]
  %v831 = vld [vmem:[%s820 + $0x50] sm:$0xff]
  %v832 = vld [vmem:[%s820 + $0x58] sm:$0xff]
  %v833 = vld [vmem:[%s820 + $0x60] sm:$0xff]
  %v834 = vld [vmem:[%s820 + $0x68] sm:$0xff]
  %v835 = vld [vmem:[%s820 + $0x70] sm:$0xff]
  %v836 = vld [vmem:[%s820 + $0x78] sm:$0xff]
  %837 = vxpose.xlu0.b32.start [1/16] %v821, 128
  %838 = vxpose.xlu0.b32.cont [2/16] %v822, 128
  %839 = vxpose.xlu0.b32.cont [3/16] %v823, 128
  %840 = vxpose.xlu0.b32.cont [4/16] %v824, 128
  %841 = vxpose.xlu0.b32.cont [5/16] %v825, 128
  %842 = vxpose.xlu0.b32.cont [6/16] %v826, 128
  %843 = vxpose.xlu0.b32.cont [7/16] %v827, 128
  %844 = vxpose.xlu0.b32.cont [8/16] %v828, 128
  %845 = vxpose.xlu0.b32.cont [9/16] %v829, 128
  %846 = vxpose.xlu0.b32.cont [10/16] %v830, 128
  %847 = vxpose.xlu0.b32.cont [11/16] %v831, 128
  %848 = vxpose.xlu0.b32.cont [12/16] %v832, 128
  %849 = vxpose.xlu0.b32.cont [13/16] %v833, 128
  %850 = vxpose.xlu0.b32.cont [14/16] %v834, 128
  %851 = vxpose.xlu0.b32.cont [15/16] %v835, 128
  %852 = vxpose.xlu0.b32.end [16/16] %v836, 128
  %v853 = vpop.trf.xlu0
  %v854 = vpop.trf.xlu0
  %v855 = vpop.trf.xlu0
  %v856 = vpop.trf.xlu0
  %v857 = vpop.trf.xlu0
  %v858 = vpop.trf.xlu0
  %v859 = vpop.trf.xlu0
  %v860 = vpop.trf.xlu0
  %v861 = vpop.trf.xlu0
  %v862 = vpop.trf.xlu0
  %v863 = vpop.trf.xlu0
  %v864 = vpop.trf.xlu0
  %v865 = vpop.trf.xlu0
  %v866 = vpop.trf.xlu0
  %v867 = vpop.trf.xlu0
  %v868 = vpop.trf.xlu0
  %s869 = scalar_lea.vmem %s194, 8
  %v870 = vld [vmem:[%s869] sm:$0x3]
  %v871 = vunpack.c.0.s8 %v870
  %v872 = vcvt.s32.f32 %v871
  %vm873 = vcmp.gt.f32.partialorder %v872, 0.5
  %v874 = vsub.f32 1.0, %v804
  %v875 = vsel %vm873, %v804, %v874
  %v876 = vlog2.pop %v875
  %v877 = vmul.f32 %v876, 0.6931472
  %v878 = vmax.f32 %v877, -100.0
  %v879 = vsub.f32 0.0, %v878
  %s880 = scalar_lea.vmem %s202, 8
  %v881 = vld [vmem:[%s880] sm:$0x3]
  %v882 = vunpack.c.0.s8 %v881
  %v883 = vcvt.s32.f32 %v882
  %vm884 = vcmp.gt.f32.partialorder %v883, 0.5
  %v885 = vsub.f32 1.0, %v853
  %v886 = vsel %vm884, %v853, %v885
  %v887 = vlog2.pop %v886
  %v888 = vmul.f32 %v887, 0.6931472
  %v889 = vmax.f32 %v888, -100.0
  %v890 = vsub.f32 0.0, %v889
  %v891 = vadd.f32 %v879, %v890
  %v892 = vrot.slane %v891, 4
  %v893 = vadd.f32 %v891, %v892
  %v894 = vrot.slane %v893, 2
  %v895 = vadd.f32 %v893, %v894
  %v896 = vrot.slane %v895, 1
  %v897 = vadd.f32 %v895, %v896
  %v898 = vmul.f32 %v897, %v217
  %v900 = vrot.slane %v898, 4
  %v902 = vadd.f32 %v770, %v900
  %s903 = scalar_lea.vmem %s165, 640
  %v904 = vld [vmem:[%s903] sm:$0xff]
  %v905 = vld [vmem:[%s903 + $0x8] sm:$0xff]
  %v906 = vld [vmem:[%s903 + $0x10] sm:$0xff]
  %v907 = vld [vmem:[%s903 + $0x18] sm:$0xff]
  %v908 = vld [vmem:[%s903 + $0x20] sm:$0xff]
  %v909 = vld [vmem:[%s903 + $0x28] sm:$0xff]
  %v910 = vld [vmem:[%s903 + $0x30] sm:$0xff]
  %v911 = vld [vmem:[%s903 + $0x38] sm:$0xff]
  %v912 = vld [vmem:[%s903 + $0x40] sm:$0xff]
  %v913 = vld [vmem:[%s903 + $0x48] sm:$0xff]
  %v914 = vld [vmem:[%s903 + $0x50] sm:$0xff]
  %v915 = vld [vmem:[%s903 + $0x58] sm:$0xff]
  %v916 = vld [vmem:[%s903 + $0x60] sm:$0xff]
  %v917 = vld [vmem:[%s903 + $0x68] sm:$0xff]
  %v918 = vld [vmem:[%s903 + $0x70] sm:$0xff]
  %v919 = vld [vmem:[%s903 + $0x78] sm:$0xff]
  %920 = vxpose.xlu0.b32.start [1/16] %v904, 128
  %921 = vxpose.xlu0.b32.cont [2/16] %v905, 128
  %922 = vxpose.xlu0.b32.cont [3/16] %v906, 128
  %923 = vxpose.xlu0.b32.cont [4/16] %v907, 128
  %924 = vxpose.xlu0.b32.cont [5/16] %v908, 128
  %925 = vxpose.xlu0.b32.cont [6/16] %v909, 128
  %926 = vxpose.xlu0.b32.cont [7/16] %v910, 128
  %927 = vxpose.xlu0.b32.cont [8/16] %v911, 128
  %928 = vxpose.xlu0.b32.cont [9/16] %v912, 128
  %929 = vxpose.xlu0.b32.cont [10/16] %v913, 128
  %930 = vxpose.xlu0.b32.cont [11/16] %v914, 128
  %931 = vxpose.xlu0.b32.cont [12/16] %v915, 128
  %932 = vxpose.xlu0.b32.cont [13/16] %v916, 128
  %933 = vxpose.xlu0.b32.cont [14/16] %v917, 128
  %934 = vxpose.xlu0.b32.cont [15/16] %v918, 128
  %935 = vxpose.xlu0.b32.end [16/16] %v919, 128
  %v936 = vpop.trf.xlu0
  %v937 = vpop.trf.xlu0
  %v938 = vpop.trf.xlu0
  %v939 = vpop.trf.xlu0
  %v940 = vpop.trf.xlu0
  %v941 = vpop.trf.xlu0
  %v942 = vpop.trf.xlu0
  %v943 = vpop.trf.xlu0
  %v944 = vpop.trf.xlu0
  %v945 = vpop.trf.xlu0
  %v946 = vpop.trf.xlu0
  %v947 = vpop.trf.xlu0
  %v948 = vpop.trf.xlu0
  %v949 = vpop.trf.xlu0
  %v950 = vpop.trf.xlu0
  %v951 = vpop.trf.xlu0
  %s952 = scalar_lea.vmem %s174, 640
  %v953 = vld [vmem:[%s952] sm:$0xff]
  %v954 = vld [vmem:[%s952 + $0x8] sm:$0xff]
  %v955 = vld [vmem:[%s952 + $0x10] sm:$0xff]
  %v956 = vld [vmem:[%s952 + $0x18] sm:$0xff]
  %v957 = vld [vmem:[%s952 + $0x20] sm:$0xff]
  %v958 = vld [vmem:[%s952 + $0x28] sm:$0xff]
  %v959 = vld [vmem:[%s952 + $0x30] sm:$0xff]
  %v960 = vld [vmem:[%s952 + $0x38] sm:$0xff]
  %v961 = vld [vmem:[%s952 + $0x40] sm:$0xff]
  %v962 = vld [vmem:[%s952 + $0x48] sm:$0xff]
  %v963 = vld [vmem:[%s952 + $0x50] sm:$0xff]
  %v964 = vld [vmem:[%s952 + $0x58] sm:$0xff]
  %v965 = vld [vmem:[%s952 + $0x60] sm:$0xff]
  %v966 = vld [vmem:[%s952 + $0x68] sm:$0xff]
  %v967 = vld [vmem:[%s952 + $0x70] sm:$0xff]
  %v968 = vld [vmem:[%s952 + $0x78] sm:$0xff]
  %969 = vxpose.xlu0.b32.start [1/16] %v953, 128
  %970 = vxpose.xlu0.b32.cont [2/16] %v954, 128
  %971 = vxpose.xlu0.b32.cont [3/16] %v955, 128
  %972 = vxpose.xlu0.b32.cont [4/16] %v956, 128
  %973 = vxpose.xlu0.b32.cont [5/16] %v957, 128
  %974 = vxpose.xlu0.b32.cont [6/16] %v958, 128
  %975 = vxpose.xlu0.b32.cont [7/16] %v959, 128
  %976 = vxpose.xlu0.b32.cont [8/16] %v960, 128
  %977 = vxpose.xlu0.b32.cont [9/16] %v961, 128
  %978 = vxpose.xlu0.b32.cont [10/16] %v962, 128
  %979 = vxpose.xlu0.b32.cont [11/16] %v963, 128
  %980 = vxpose.xlu0.b32.cont [12/16] %v964, 128
  %981 = vxpose.xlu0.b32.cont [13/16] %v965, 128
  %982 = vxpose.xlu0.b32.cont [14/16] %v966, 128
  %983 = vxpose.xlu0.b32.cont [15/16] %v967, 128
  %984 = vxpose.xlu0.b32.end [16/16] %v968, 128
  %v985 = vpop.trf.xlu0
  %v986 = vpop.trf.xlu0
  %v987 = vpop.trf.xlu0
  %v988 = vpop.trf.xlu0
  %v989 = vpop.trf.xlu0
  %v990 = vpop.trf.xlu0
  %v991 = vpop.trf.xlu0
  %v992 = vpop.trf.xlu0
  %v993 = vpop.trf.xlu0
  %v994 = vpop.trf.xlu0
  %v995 = vpop.trf.xlu0
  %v996 = vpop.trf.xlu0
  %v997 = vpop.trf.xlu0
  %v998 = vpop.trf.xlu0
  %v999 = vpop.trf.xlu0
  %v1000 = vpop.trf.xlu0
  %s1001 = scalar_lea.vmem %s194, 10
  %v1002 = vld [vmem:[%s1001] sm:$0x3]
  %v1003 = vunpack.c.0.s8 %v1002
  %v1004 = vcvt.s32.f32 %v1003
  %vm1005 = vcmp.gt.f32.partialorder %v1004, 0.5
  %v1006 = vsub.f32 1.0, %v936
  %v1007 = vsel %vm1005, %v936, %v1006
  %v1008 = vlog2.pop %v1007
  %v1009 = vmul.f32 %v1008, 0.6931472
  %v1010 = vmax.f32 %v1009, -100.0
  %v1011 = vsub.f32 0.0, %v1010
  %s1012 = scalar_lea.vmem %s202, 10
  %v1013 = vld [vmem:[%s1012] sm:$0x3]
  %v1014 = vunpack.c.0.s8 %v1013
  %v1015 = vcvt.s32.f32 %v1014
  %vm1016 = vcmp.gt.f32.partialorder %v1015, 0.5
  %v1017 = vsub.f32 1.0, %v985
  %v1018 = vsel %vm1016, %v985, %v1017
  %v1019 = vlog2.pop %v1018
  %v1020 = vmul.f32 %v1019, 0.6931472
  %v1021 = vmax.f32 %v1020, -100.0
  %v1022 = vsub.f32 0.0, %v1021
  %v1023 = vadd.f32 %v1011, %v1022
  %v1024 = vrot.slane %v1023, 4
  %v1025 = vadd.f32 %v1023, %v1024
  %v1026 = vrot.slane %v1025, 2
  %v1027 = vadd.f32 %v1025, %v1026
  %v1028 = vrot.slane %v1027, 1
  %v1029 = vadd.f32 %v1027, %v1028
  %v1030 = vmul.f32 %v1029, %v217
  %v1032 = vrot.slane %v1030, 5
  %v1034 = vadd.f32 %v902, %v1032
  %s1035 = scalar_lea.vmem %s165, 768
  %v1036 = vld [vmem:[%s1035] sm:$0xff]
  %v1037 = vld [vmem:[%s1035 + $0x8] sm:$0xff]
  %v1038 = vld [vmem:[%s1035 + $0x10] sm:$0xff]
  %v1039 = vld [vmem:[%s1035 + $0x18] sm:$0xff]
  %v1040 = vld [vmem:[%s1035 + $0x20] sm:$0xff]
  %v1041 = vld [vmem:[%s1035 + $0x28] sm:$0xff]
  %v1042 = vld [vmem:[%s1035 + $0x30] sm:$0xff]
  %v1043 = vld [vmem:[%s1035 + $0x38] sm:$0xff]
  %v1044 = vld [vmem:[%s1035 + $0x40] sm:$0xff]
  %v1045 = vld [vmem:[%s1035 + $0x48] sm:$0xff]
  %v1046 = vld [vmem:[%s1035 + $0x50] sm:$0xff]
  %v1047 = vld [vmem:[%s1035 + $0x58] sm:$0xff]
  %v1048 = vld [vmem:[%s1035 + $0x60] sm:$0xff]
  %v1049 = vld [vmem:[%s1035 + $0x68] sm:$0xff]
  %v1050 = vld [vmem:[%s1035 + $0x70] sm:$0xff]
  %v1051 = vld [vmem:[%s1035 + $0x78] sm:$0xff]
  %1052 = vxpose.xlu0.b32.start [1/16] %v1036, 128
  %1053 = vxpose.xlu0.b32.cont [2/16] %v1037, 128
  %1054 = vxpose.xlu0.b32.cont [3/16] %v1038, 128
  %1055 = vxpose.xlu0.b32.cont [4/16] %v1039, 128
  %1056 = vxpose.xlu0.b32.cont [5/16] %v1040, 128
  %1057 = vxpose.xlu0.b32.cont [6/16] %v1041, 128
  %1058 = vxpose.xlu0.b32.cont [7/16] %v1042, 128
  %1059 = vxpose.xlu0.b32.cont [8/16] %v1043, 128
  %1060 = vxpose.xlu0.b32.cont [9/16] %v1044, 128
  %1061 = vxpose.xlu0.b32.cont [10/16] %v1045, 128
  %1062 = vxpose.xlu0.b32.cont [11/16] %v1046, 128
  %1063 = vxpose.xlu0.b32.cont [12/16] %v1047, 128
  %1064 = vxpose.xlu0.b32.cont [13/16] %v1048, 128
  %1065 = vxpose.xlu0.b32.cont [14/16] %v1049, 128
  %1066 = vxpose.xlu0.b32.cont [15/16] %v1050, 128
  %1067 = vxpose.xlu0.b32.end [16/16] %v1051, 128
  %v1068 = vpop.trf.xlu0
  %v1069 = vpop.trf.xlu0
  %v1070 = vpop.trf.xlu0
  %v1071 = vpop.trf.xlu0
  %v1072 = vpop.trf.xlu0
  %v1073 = vpop.trf.xlu0
  %v1074 = vpop.trf.xlu0
  %v1075 = vpop.trf.xlu0
  %v1076 = vpop.trf.xlu0
  %v1077 = vpop.trf.xlu0
  %v1078 = vpop.trf.xlu0
  %v1079 = vpop.trf.xlu0
  %v1080 = vpop.trf.xlu0
  %v1081 = vpop.trf.xlu0
  %v1082 = vpop.trf.xlu0
  %v1083 = vpop.trf.xlu0
  %s1084 = scalar_lea.vmem %s174, 768
  %v1085 = vld [vmem:[%s1084] sm:$0xff]
  %v1086 = vld [vmem:[%s1084 + $0x8] sm:$0xff]
  %v1087 = vld [vmem:[%s1084 + $0x10] sm:$0xff]
  %v1088 = vld [vmem:[%s1084 + $0x18] sm:$0xff]
  %v1089 = vld [vmem:[%s1084 + $0x20] sm:$0xff]
  %v1090 = vld [vmem:[%s1084 + $0x28] sm:$0xff]
  %v1091 = vld [vmem:[%s1084 + $0x30] sm:$0xff]
  %v1092 = vld [vmem:[%s1084 + $0x38] sm:$0xff]
  %v1093 = vld [vmem:[%s1084 + $0x40] sm:$0xff]
  %v1094 = vld [vmem:[%s1084 + $0x48] sm:$0xff]
  %v1095 = vld [vmem:[%s1084 + $0x50] sm:$0xff]
  %v1096 = vld [vmem:[%s1084 + $0x58] sm:$0xff]
  %v1097 = vld [vmem:[%s1084 + $0x60] sm:$0xff]
  %v1098 = vld [vmem:[%s1084 + $0x68] sm:$0xff]
  %v1099 = vld [vmem:[%s1084 + $0x70] sm:$0xff]
  %v1100 = vld [vmem:[%s1084 + $0x78] sm:$0xff]
  %1101 = vxpose.xlu0.b32.start [1/16] %v1085, 128
  %1102 = vxpose.xlu0.b32.cont [2/16] %v1086, 128
  %1103 = vxpose.xlu0.b32.cont [3/16] %v1087, 128
  %1104 = vxpose.xlu0.b32.cont [4/16] %v1088, 128
  %1105 = vxpose.xlu0.b32.cont [5/16] %v1089, 128
  %1106 = vxpose.xlu0.b32.cont [6/16] %v1090, 128
  %1107 = vxpose.xlu0.b32.cont [7/16] %v1091, 128
  %1108 = vxpose.xlu0.b32.cont [8/16] %v1092, 128
  %1109 = vxpose.xlu0.b32.cont [9/16] %v1093, 128
  %1110 = vxpose.xlu0.b32.cont [10/16] %v1094, 128
  %1111 = vxpose.xlu0.b32.cont [11/16] %v1095, 128
  %1112 = vxpose.xlu0.b32.cont [12/16] %v1096, 128
  %1113 = vxpose.xlu0.b32.cont [13/16] %v1097, 128
  %1114 = vxpose.xlu0.b32.cont [14/16] %v1098, 128
  %1115 = vxpose.xlu0.b32.cont [15/16] %v1099, 128
  %1116 = vxpose.xlu0.b32.end [16/16] %v1100, 128
  %v1117 = vpop.trf.xlu0
  %v1118 = vpop.trf.xlu0
  %v1119 = vpop.trf.xlu0
  %v1120 = vpop.trf.xlu0
  %v1121 = vpop.trf.xlu0
  %v1122 = vpop.trf.xlu0
  %v1123 = vpop.trf.xlu0
  %v1124 = vpop.trf.xlu0
  %v1125 = vpop.trf.xlu0
  %v1126 = vpop.trf.xlu0
  %v1127 = vpop.trf.xlu0
  %v1128 = vpop.trf.xlu0
  %v1129 = vpop.trf.xlu0
  %v1130 = vpop.trf.xlu0
  %v1131 = vpop.trf.xlu0
  %v1132 = vpop.trf.xlu0
  %s1133 = scalar_lea.vmem %s194, 12
  %v1134 = vld [vmem:[%s1133] sm:$0x3]
  %v1135 = vunpack.c.0.s8 %v1134
  %v1136 = vcvt.s32.f32 %v1135
  %vm1137 = vcmp.gt.f32.partialorder %v1136, 0.5
  %v1138 = vsub.f32 1.0, %v1068
  %v1139 = vsel %vm1137, %v1068, %v1138
  %v1140 = vlog2.pop %v1139
  %v1141 = vmul.f32 %v1140, 0.6931472
  %v1142 = vmax.f32 %v1141, -100.0
  %v1143 = vsub.f32 0.0, %v1142
  %s1144 = scalar_lea.vmem %s202, 12
  %v1145 = vld [vmem:[%s1144] sm:$0x3]
  %v1146 = vunpack.c.0.s8 %v1145
  %v1147 = vcvt.s32.f32 %v1146
  %vm1148 = vcmp.gt.f32.partialorder %v1147, 0.5
  %v1149 = vsub.f32 1.0, %v1117
  %v1150 = vsel %vm1148, %v1117, %v1149
  %v1151 = vlog2.pop %v1150
  %v1152 = vmul.f32 %v1151, 0.6931472
  %v1153 = vmax.f32 %v1152, -100.0
  %v1154 = vsub.f32 0.0, %v1153
  %v1155 = vadd.f32 %v1143, %v1154
  %v1156 = vrot.slane %v1155, 4
  %v1157 = vadd.f32 %v1155, %v1156
  %v1158 = vrot.slane %v1157, 2
  %v1159 = vadd.f32 %v1157, %v1158
  %v1160 = vrot.slane %v1159, 1
  %v1161 = vadd.f32 %v1159, %v1160
  %v1162 = vmul.f32 %v1161, %v217
  %v1164 = vrot.slane %v1162, 6
  %v1166 = vadd.f32 %v1034, %v1164
  %s1167 = scalar_lea.vmem %s165, 896
  %v1168 = vld [vmem:[%s1167] sm:$0xff]
  %v1169 = vld [vmem:[%s1167 + $0x8] sm:$0xff]
  %v1170 = vld [vmem:[%s1167 + $0x10] sm:$0xff]
  %v1171 = vld [vmem:[%s1167 + $0x18] sm:$0xff]
  %v1172 = vld [vmem:[%s1167 + $0x20] sm:$0xff]
  %v1173 = vld [vmem:[%s1167 + $0x28] sm:$0xff]
  %v1174 = vld [vmem:[%s1167 + $0x30] sm:$0xff]
  %v1175 = vld [vmem:[%s1167 + $0x38] sm:$0xff]
  %v1176 = vld [vmem:[%s1167 + $0x40] sm:$0xff]
  %v1177 = vld [vmem:[%s1167 + $0x48] sm:$0xff]
  %v1178 = vld [vmem:[%s1167 + $0x50] sm:$0xff]
  %v1179 = vld [vmem:[%s1167 + $0x58] sm:$0xff]
  %v1180 = vld [vmem:[%s1167 + $0x60] sm:$0xff]
  %v1181 = vld [vmem:[%s1167 + $0x68] sm:$0xff]
  %v1182 = vld [vmem:[%s1167 + $0x70] sm:$0xff]
  %v1183 = vld [vmem:[%s1167 + $0x78] sm:$0xff]
  %1184 = vxpose.xlu0.b32.start [1/16] %v1168, 128
  %1185 = vxpose.xlu0.b32.cont [2/16] %v1169, 128
  %1186 = vxpose.xlu0.b32.cont [3/16] %v1170, 128
  %1187 = vxpose.xlu0.b32.cont [4/16] %v1171, 128
  %1188 = vxpose.xlu0.b32.cont [5/16] %v1172, 128
  %1189 = vxpose.xlu0.b32.cont [6/16] %v1173, 128
  %1190 = vxpose.xlu0.b32.cont [7/16] %v1174, 128
  %1191 = vxpose.xlu0.b32.cont [8/16] %v1175, 128
  %1192 = vxpose.xlu0.b32.cont [9/16] %v1176, 128
  %1193 = vxpose.xlu0.b32.cont [10/16] %v1177, 128
  %1194 = vxpose.xlu0.b32.cont [11/16] %v1178, 128
  %1195 = vxpose.xlu0.b32.cont [12/16] %v1179, 128
  %1196 = vxpose.xlu0.b32.cont [13/16] %v1180, 128
  %1197 = vxpose.xlu0.b32.cont [14/16] %v1181, 128
  %1198 = vxpose.xlu0.b32.cont [15/16] %v1182, 128
  %1199 = vxpose.xlu0.b32.end [16/16] %v1183, 128
  %v1200 = vpop.trf.xlu0
  %v1201 = vpop.trf.xlu0
  %v1202 = vpop.trf.xlu0
  %v1203 = vpop.trf.xlu0
  %v1204 = vpop.trf.xlu0
  %v1205 = vpop.trf.xlu0
  %v1206 = vpop.trf.xlu0
  %v1207 = vpop.trf.xlu0
  %v1208 = vpop.trf.xlu0
  %v1209 = vpop.trf.xlu0
  %v1210 = vpop.trf.xlu0
  %v1211 = vpop.trf.xlu0
  %v1212 = vpop.trf.xlu0
  %v1213 = vpop.trf.xlu0
  %v1214 = vpop.trf.xlu0
  %v1215 = vpop.trf.xlu0
  %s1216 = scalar_lea.vmem %s174, 896
  %v1217 = vld [vmem:[%s1216] sm:$0xff]
  %v1218 = vld [vmem:[%s1216 + $0x8] sm:$0xff]
  %v1219 = vld [vmem:[%s1216 + $0x10] sm:$0xff]
  %v1220 = vld [vmem:[%s1216 + $0x18] sm:$0xff]
  %v1221 = vld [vmem:[%s1216 + $0x20] sm:$0xff]
  %v1222 = vld [vmem:[%s1216 + $0x28] sm:$0xff]
  %v1223 = vld [vmem:[%s1216 + $0x30] sm:$0xff]
  %v1224 = vld [vmem:[%s1216 + $0x38] sm:$0xff]
  %v1225 = vld [vmem:[%s1216 + $0x40] sm:$0xff]
  %v1226 = vld [vmem:[%s1216 + $0x48] sm:$0xff]
  %v1227 = vld [vmem:[%s1216 + $0x50] sm:$0xff]
  %v1228 = vld [vmem:[%s1216 + $0x58] sm:$0xff]
  %v1229 = vld [vmem:[%s1216 + $0x60] sm:$0xff]
  %v1230 = vld [vmem:[%s1216 + $0x68] sm:$0xff]
  %v1231 = vld [vmem:[%s1216 + $0x70] sm:$0xff]
  %v1232 = vld [vmem:[%s1216 + $0x78] sm:$0xff]
  %1233 = vxpose.xlu0.b32.start [1/16] %v1217, 128
  %1234 = vxpose.xlu0.b32.cont [2/16] %v1218, 128
  %1235 = vxpose.xlu0.b32.cont [3/16] %v1219, 128
  %1236 = vxpose.xlu0.b32.cont [4/16] %v1220, 128
  %1237 = vxpose.xlu0.b32.cont [5/16] %v1221, 128
  %1238 = vxpose.xlu0.b32.cont [6/16] %v1222, 128
  %1239 = vxpose.xlu0.b32.cont [7/16] %v1223, 128
  %1240 = vxpose.xlu0.b32.cont [8/16] %v1224, 128
  %1241 = vxpose.xlu0.b32.cont [9/16] %v1225, 128
  %1242 = vxpose.xlu0.b32.cont [10/16] %v1226, 128
  %1243 = vxpose.xlu0.b32.cont [11/16] %v1227, 128
  %1244 = vxpose.xlu0.b32.cont [12/16] %v1228, 128
  %1245 = vxpose.xlu0.b32.cont [13/16] %v1229, 128
  %1246 = vxpose.xlu0.b32.cont [14/16] %v1230, 128
  %1247 = vxpose.xlu0.b32.cont [15/16] %v1231, 128
  %1248 = vxpose.xlu0.b32.end [16/16] %v1232, 128
  %v1249 = vpop.trf.xlu0
  %v1250 = vpop.trf.xlu0
  %v1251 = vpop.trf.xlu0
  %v1252 = vpop.trf.xlu0
  %v1253 = vpop.trf.xlu0
  %v1254 = vpop.trf.xlu0
  %v1255 = vpop.trf.xlu0
  %v1256 = vpop.trf.xlu0
  %v1257 = vpop.trf.xlu0
  %v1258 = vpop.trf.xlu0
  %v1259 = vpop.trf.xlu0
  %v1260 = vpop.trf.xlu0
  %v1261 = vpop.trf.xlu0
  %v1262 = vpop.trf.xlu0
  %v1263 = vpop.trf.xlu0
  %v1264 = vpop.trf.xlu0
  %s1265 = scalar_lea.vmem %s194, 14
  %v1266 = vld [vmem:[%s1265] sm:$0x3]
  %v1267 = vunpack.c.0.s8 %v1266
  %v1268 = vcvt.s32.f32 %v1267
  %vm1269 = vcmp.gt.f32.partialorder %v1268, 0.5
  %v1270 = vsub.f32 1.0, %v1200
  %v1271 = vsel %vm1269, %v1200, %v1270
  %v1272 = vlog2.pop %v1271
  %v1273 = vmul.f32 %v1272, 0.6931472
  %v1274 = vmax.f32 %v1273, -100.0
  %v1275 = vsub.f32 0.0, %v1274
  %s1276 = scalar_lea.vmem %s202, 14
  %v1277 = vld [vmem:[%s1276] sm:$0x3]
  %v1278 = vunpack.c.0.s8 %v1277
  %v1279 = vcvt.s32.f32 %v1278
  %vm1280 = vcmp.gt.f32.partialorder %v1279, 0.5
  %v1281 = vsub.f32 1.0, %v1249
  %v1282 = vsel %vm1280, %v1249, %v1281
  %v1283 = vlog2.pop %v1282
  %v1284 = vmul.f32 %v1283, 0.6931472
  %v1285 = vmax.f32 %v1284, -100.0
  %v1286 = vsub.f32 0.0, %v1285
  %v1287 = vadd.f32 %v1275, %v1286
  %v1288 = vrot.slane %v1287, 4
  %v1289 = vadd.f32 %v1287, %v1288
  %v1290 = vrot.slane %v1289, 2
  %v1291 = vadd.f32 %v1289, %v1290
  %v1292 = vrot.slane %v1291, 1
  %v1293 = vadd.f32 %v1291, %v1292
  %v1294 = vmul.f32 %v1293, %v217
  %v1296 = vrot.slane %v1294, 7
  %v1298 = vadd.f32 %v1166, %v1296
  %v1299 = vld [vmem:[%s9] sm:$0x1]
  %v1300 = vadd.f32 %v1299, %v243
  %1301 = vst [vmem:[%s9] sm:$0x1] %v1300
  %v1302 = vld [vmem:[%s9 + $0x1] sm:$0x1]
  %v1303 = vadd.f32 %v1302, %v1298
  %1304 = vst [vmem:[%s9 + $0x1] sm:$0x1] %v1303
  %v1305 = vld [vmem:[%s9 + $0x2] sm:$0x1]
  %v1306 = vadd.f32 %v1305, %v249
  %1307 = vst [vmem:[%s9 + $0x2] sm:$0x1] %v1306
  // Predicated region
  $region42: #{tpu_custom_call.1} parent=0 // pred_check
    _
  $region43: #{tpu_custom_call.1} parent=0 // pred_check_branch
    %1309 = sbr.rel (0) target = $region45
  $region44: #{tpu_custom_call.1} parent=0 // pred_region
    _
  $region45: #{tpu_custom_call.1} parent=0 // pred_fallthru
    _
  // Predicated region
  $region46: #{tpu_custom_call.1} parent=0 // pred_check
    _
  $region47: #{tpu_custom_call.1} parent=0 // pred_check_branch
    %1311 = sbr.rel (0) target = $region49
  $region48: #{tpu_custom_call.1} parent=0 // pred_region
    _
  $region49: #{tpu_custom_call.1} parent=0 // pred_fallthru
    _

</llo_original>
